<compile_context>
chip_gen: v7x
topology: tpu7x:2x2x1
jax: 0.10.0
libtpu: 0.0.40
codegen_flags: <defaults>
</compile_context>

<pallas_src>
import math

import jax
import jax.numpy as jnp
from jax import lax
from jax.experimental import pallas as pl
from jax.experimental.pallas import tpu as pltpu


# ----------------------------- relative shift --------------------------------
def _skew_rows_right(x, extra):
    """Circularly right-shift row i of the square matrix `x` (last axis) by
    (i + extra).  One uniform roll + log2(T) (roll, row-bit select) steps."""
    T = x.shape[-1]
    assert x.shape[-2] == T
    s = extra % T
    y = jnp.roll(x, s, axis=-1) if s else x
    row = lax.broadcasted_iota(jnp.int32, x.shape, x.ndim - 2)
    shift = 1
    while shift < T:
        y = jnp.where((row & shift) != 0, jnp.roll(y, shift, axis=-1), y)
        shift *= 2
    return y


def _relative_shift_2d(pos_score):
    """Exact equivalent of RelativeMultiHeadAttentionModule._relative_shift for
    one (T, T) matrix P:
        out[i, j] = P[i,   j - i - 1 + T]   if j <= i
                  = 0                       if j == i + 1
                  = P[i+1, j - i - 2]       if j >= i + 2
    """
    row = lax.broadcasted_iota(jnp.int32, pos_score.shape, 0)
    col = lax.broadcasted_iota(jnp.int32, pos_score.shape, 1)
    a = _skew_rows_right(pos_score, 1)                          # uses row i
    b = _skew_rows_right(jnp.roll(pos_score, -1, axis=0), 2)    # uses row i+1
    zero = jnp.zeros_like(pos_score)
    return jnp.where(col <= row, a, jnp.where(col == row + 1, zero, b))


# --------------------------------- kernel ------------------------------------
def rmha_kernel(xq_ref, xk_ref, xv_ref, xp_ref,
                wq_ref, wk_ref, wv_ref, wp_ref, wo_ref,
                bq_ref, bk_ref, bv_ref, bo_ref,
                u_ref, vb_ref,
                o_ref):
    h = pl.program_id(1)
    _, T, D = xq_ref.shape            # D = d_model
    f32 = jnp.float32
    bf16 = jnp.bfloat16
    inv_sqrt_d = 1.0 / math.sqrt(D)   # module scales by sqrt(d_model)

    xq = xq_ref[0]                    # (T, D) bf16
    xk = xk_ref[0]
    xv = xv_ref[0]
    xp = xp_ref[0]

    # Per-head projections: bf16 MXU operands, f32 accumulation.
    q = jnp.dot(xq, wq_ref[0], preferred_element_type=f32) + bq_ref[0]   # (T, Dh)
    k = jnp.dot(xk, wk_ref[0], preferred_element_type=f32) + bk_ref[0]
    v = jnp.dot(xv, wv_ref[0], preferred_element_type=f32) + bv_ref[0]
    p = jnp.dot(xp, wp_ref[0], preferred_element_type=f32)               # no bias

    # Fold the 1/sqrt(d_model) scale into the query-side operands (once).
    q_u = ((q + u_ref[0]) * inv_sqrt_d).astype(bf16)
    q_v = ((q + vb_ref[0]) * inv_sqrt_d).astype(bf16)
    k_b = k.astype(bf16)
    p_b = p.astype(bf16)

    content = jnp.einsum('td,sd->ts', q_u, k_b, preferred_element_type=f32)
    pos_sc = jnp.einsum('td,sd->ts', q_v, p_b, preferred_element_type=f32)
    pos_sc = _relative_shift_2d(pos_sc)

    score = content + pos_sc
    # TODO(synk): optional boolean mask (masked_fill with -1e9) not implemented
    #             (mask=None path only).
    m = jnp.max(score, axis=-1, keepdims=True)
    e = jnp.exp(score - m)
    denom = jnp.sum(e, axis=-1, keepdims=True)
    attn = e * pl.reciprocal(denom, approx=True)
    # TODO(synk): nn.Dropout is identity at inference time; omitted.

    ctx = jnp.dot(attn.astype(bf16), v.astype(bf16),
                  preferred_element_type=f32)                    # (T, Dh)
    contrib = jnp.dot(ctx.astype(bf16), wo_ref[0],
                      preferred_element_type=f32)                # (T, D)

    # Accumulate the output projection over the head (reduction) grid axis.
    @pl.when(h == 0)
    def _():
        o_ref[0] = contrib + bo_ref[0]

    @pl.when(h != 0)
    def _():
        o_ref[0] = o_ref[0] + contrib


# -------------------------------- wrapper -------------------------------------
def rmha_pallas(query, key, value, pos_emb, params):
    B, T, D = query.shape
    H, Dh = params['u_bias'].shape
    bf16 = jnp.bfloat16
    f32 = jnp.float32

    # Head-split the weights in the wrapper so the kernel sees whole tiles.
    def split_w(w):                      # (D, D) -> (H, D, Dh); head h = cols h*Dh:(h+1)*Dh
        return jnp.transpose(w.reshape(D, H, Dh), (1, 0, 2)).astype(bf16)

    def split_b(b):                      # (1, D) -> (H, 1, Dh), f32
        return b.reshape(H, Dh)[:, None, :].astype(f32)

    wq = split_w(params['wq']); wk = split_w(params['wk'])
    wv = split_w(params['wv']); wp = split_w(params['wp'])
    wo = params['wo'].reshape(H, Dh, D).astype(bf16)             # rows h*Dh:(h+1)*Dh

    bq = split_b(params['bq']); bk = split_b(params['bk']); bv = split_b(params['bv'])
    bo = params['bo'].reshape(1, D).astype(f32)
    u = params['u_bias'][:, None, :].astype(f32)
    vb = params['v_bias'][:, None, :].astype(f32)

    xq = query.astype(bf16); xk = key.astype(bf16)
    xv = value.astype(bf16); xp = pos_emb.astype(bf16)

    act_spec = pl.BlockSpec((1, T, D), lambda b, h: (b, 0, 0))
    wh_spec = pl.BlockSpec((1, D, Dh), lambda b, h: (h, 0, 0))
    bh_spec = pl.BlockSpec((1, 1, Dh), lambda b, h: (h, 0, 0))
    wo_spec = pl.BlockSpec((1, Dh, D), lambda b, h: (h, 0, 0))
    bo_spec = pl.BlockSpec((1, D), lambda b, h: (0, 0))

    grid_spec = pltpu.PrefetchScalarGridSpec(
        num_scalar_prefetch=0,
        grid=(B, H),                       # heads iterate innermost (reduction)
        in_specs=[act_spec] * 4
                + [wh_spec] * 4
                + [wo_spec]
                + [bh_spec] * 3
                + [bo_spec]
                + [bh_spec] * 2,
        out_specs=pl.BlockSpec((1, T, D), lambda b, h: (b, 0, 0)),
    )

    fn = pl.pallas_call(
        rmha_kernel,
        out_shape=jax.ShapeDtypeStruct((B, T, D), jnp.float32),
        grid_spec=grid_spec,
        compiler_params=pltpu.CompilerParams(
            dimension_semantics=("parallel", "arbitrary")),
    )
    return fn(xq, xk, xv, xp, wq, wk, wv, wp, wo, bq, bk, bv, bo, u, vb)


# ----------------------------- pure-JAX reference ----------------------------
def _rel_shift_ref(pos_score):
    B, H, T1, T2 = pos_score.shape
    zeros = jnp.zeros((B, H, T1, 1), pos_score.dtype)
    padded = jnp.concatenate([zeros, pos_score], axis=-1)
    padded = padded.reshape(B, H, T2 + 1, T1)
    return padded[:, :, 1:].reshape(B, H, T1, T2)


def reference_forward(query, key, value, pos_emb, P):
    B, T, D = query.shape
    H, Dh = P['u_bias'].shape
    prec = lax.Precision.HIGHEST

    q = jnp.dot(query, P['wq'], precision=prec) + P['bq']
    k = jnp.dot(key, P['wk'], precision=prec) + P['bk']
    v = jnp.dot(value, P['wv'], precision=prec) + P['bv']
    p = jnp.dot(pos_emb, P['wp'], precision=prec)

    q4 = q.reshape(B, T, H, Dh)
    k4 = k.reshape(B, T, H, Dh).transpose(0, 2, 1, 3)
    v4 = v.reshape(B, T, H, Dh).transpose(0, 2, 1, 3)
    p4 = p.reshape(B, T, H, Dh).transpose(0, 2, 1, 3)

    content = jnp.einsum('bihd,bhjd->bhij', q4 + P['u_bias'], k4, precision=prec)
    pos_sc = jnp.einsum('bihd,bhjd->bhij', q4 + P['v_bias'], p4, precision=prec)
    pos_sc = _rel_shift_ref(pos_sc)

    score = (content + pos_sc) / math.sqrt(D)
    attn = jax.nn.softmax(score, axis=-1)
    ctx = jnp.einsum('bhij,bhjd->bihd', attn, v4, precision=prec).reshape(B, T, D)
    return jnp.dot(ctx, P['wo'], precision=prec) + P['bo']


# --------------------------------- parameters --------------------------------
def init_params(key, d_model, num_heads):
    d_head = d_model // num_heads
    ks = jax.random.split(key, 11)
    s = 1.0 / math.sqrt(d_model)

    def lin_w(k):
        return jax.random.normal(k, (d_model, d_model), jnp.float32) * s

    def lin_b(k):
        return jax.random.normal(k, (1, d_model), jnp.float32) * 0.02

    xav = math.sqrt(6.0 / (num_heads + d_head))  # xavier_uniform bound for (H, Dh)
    return dict(
        wq=lin_w(ks[0]), bq=lin_b(ks[1]),
        wk=lin_w(ks[2]), bk=lin_b(ks[3]),
        wv=lin_w(ks[4]), bv=lin_b(ks[5]),
        wp=lin_w(ks[6]),
        u_bias=jax.random.uniform(ks[7], (num_heads, d_head), jnp.float32, -xav, xav),
        v_bias=jax.random.uniform(ks[8], (num_heads, d_head), jnp.float32, -xav, xav),
        wo=lin_w(ks[9]), bo=lin_b(ks[10]),
    )


if __name__ == "__main__":
    # Small but lane-dense shapes: d_model=128 (one full lane group), 4 heads,
    # d_head=32, seq=8, batch=2.
    B, T, D, H = 2, 8, 128, 4

    root = jax.random.PRNGKey(0)
    kp, kq, kk, kv, ke = jax.random.split(root, 5)
    params = init_params(kp, D, H)

    query = jax.random.normal(kq, (B, T, D), jnp.float32)
    key_in = jax.random.normal(kk, (B, T, D), jnp.float32)
    value = jax.random.normal(kv, (B, T, D), jnp.float32)
    pos_emb = jax.random.normal(ke, (B, T, D), jnp.float32)

    out = rmha_pallas(query, key_in, value, pos_emb, params)
    out = jax.block_until_ready(out)

    ref = reference_forward(query, key_in, value, pos_emb, params)
    assert out.shape == (B, T, D)
    max_err = float(jnp.max(jnp.abs(out - ref)))
    # Kernel uses bf16 MXU operands with f32 accumulation; reference is full f32
    # (HIGHEST), so compare with a bf16-appropriate tolerance.
    if not bool(jnp.allclose(out, ref, atol=5e-2, rtol=5e-2)):
        raise AssertionError(f"Pallas kernel mismatch vs reference, max abs err = {max_err}")

    print("KERNEL_OK")
</pallas_src>

<mosaic_0001>
module attributes {stable_mosaic.version = 11 : i64} {
  func.func @rmha_kernel(%arg0: i32, %arg1: i32, %arg2: memref<1x8x128xbf16, #tpu.memory_space<vmem>>, %arg3: memref<1x8x128xbf16, #tpu.memory_space<vmem>>, %arg4: memref<1x8x128xbf16, #tpu.memory_space<vmem>>, %arg5: memref<1x8x128xbf16, #tpu.memory_space<vmem>>, %arg6: memref<1x128x32xbf16, #tpu.memory_space<vmem>>, %arg7: memref<1x128x32xbf16, #tpu.memory_space<vmem>>, %arg8: memref<1x128x32xbf16, #tpu.memory_space<vmem>>, %arg9: memref<1x128x32xbf16, #tpu.memory_space<vmem>>, %arg10: memref<1x32x128xbf16, #tpu.memory_space<vmem>>, %arg11: memref<1x1x32xf32, #tpu.memory_space<vmem>>, %arg12: memref<1x1x32xf32, #tpu.memory_space<vmem>>, %arg13: memref<1x1x32xf32, #tpu.memory_space<vmem>>, %arg14: memref<1x128xf32, #tpu.memory_space<vmem>>, %arg15: memref<1x1x32xf32, #tpu.memory_space<vmem>>, %arg16: memref<1x1x32xf32, #tpu.memory_space<vmem>>, %arg17: memref<1x8x128xf32, #tpu.memory_space<vmem>>) attributes {dimension_semantics = [#tpu.dimension_semantics<parallel>, #tpu.dimension_semantics<arbitrary>], iteration_bounds = array<i64: 2, 4>, scalar_prefetch = 0 : i64, scratch_operands = 0 : i64, tpu.core_type = #tpu.core_type<tc>, window_params = [{transform_indices = @transform_0, window_bounds = array<i64: 1, 8, 128>}, {transform_indices = @transform_1, window_bounds = array<i64: 1, 8, 128>}, {transform_indices = @transform_2, window_bounds = array<i64: 1, 8, 128>}, {transform_indices = @transform_3, window_bounds = array<i64: 1, 8, 128>}, {transform_indices = @transform_4, window_bounds = array<i64: 1, 128, 32>}, {transform_indices = @transform_5, window_bounds = array<i64: 1, 128, 32>}, {transform_indices = @transform_6, window_bounds = array<i64: 1, 128, 32>}, {transform_indices = @transform_7, window_bounds = array<i64: 1, 128, 32>}, {transform_indices = @transform_8, window_bounds = array<i64: 1, 32, 128>}, {transform_indices = @transform_9, window_bounds = array<i64: 1, 1, 32>}, {transform_indices = @transform_10, window_bounds = array<i64: 1, 1, 32>}, {transform_indices = @transform_11, window_bounds = array<i64: 1, 1, 32>}, {pipeline_mode = #tpu.pipeline_mode<synchronous>, transform_indices = @transform_12, window_bounds = array<i64: 1, 128>}, {transform_indices = @transform_13, window_bounds = array<i64: 1, 1, 32>}, {transform_indices = @transform_14, window_bounds = array<i64: 1, 1, 32>}, {transform_indices = @transform_15, window_bounds = array<i64: 1, 8, 128>}]} {
    %c0 = arith.constant 0 : index
    %c0_0 = arith.constant 0 : index
    %c0_1 = arith.constant 0 : index
    %0 = vector.load %arg2[%c0, %c0_0, %c0_1] : memref<1x8x128xbf16, #tpu.memory_space<vmem>>, vector<1x8x128xbf16>
    %1 = vector.shape_cast %0 : vector<1x8x128xbf16> to vector<8x128xbf16>
    %c0_2 = arith.constant 0 : index
    %c0_3 = arith.constant 0 : index
    %c0_4 = arith.constant 0 : index
    %2 = vector.load %arg3[%c0_2, %c0_3, %c0_4] : memref<1x8x128xbf16, #tpu.memory_space<vmem>>, vector<1x8x128xbf16>
    %3 = vector.shape_cast %2 : vector<1x8x128xbf16> to vector<8x128xbf16>
    %c0_5 = arith.constant 0 : index
    %c0_6 = arith.constant 0 : index
    %c0_7 = arith.constant 0 : index
    %4 = vector.load %arg4[%c0_5, %c0_6, %c0_7] : memref<1x8x128xbf16, #tpu.memory_space<vmem>>, vector<1x8x128xbf16>
    %5 = vector.shape_cast %4 : vector<1x8x128xbf16> to vector<8x128xbf16>
    %c0_8 = arith.constant 0 : index
    %c0_9 = arith.constant 0 : index
    %c0_10 = arith.constant 0 : index
    %6 = vector.load %arg5[%c0_8, %c0_9, %c0_10] : memref<1x8x128xbf16, #tpu.memory_space<vmem>>, vector<1x8x128xbf16>
    %7 = vector.shape_cast %6 : vector<1x8x128xbf16> to vector<8x128xbf16>
    %c0_11 = arith.constant 0 : index
    %c0_12 = arith.constant 0 : index
    %c0_13 = arith.constant 0 : index
    %8 = vector.load %arg6[%c0_11, %c0_12, %c0_13] : memref<1x128x32xbf16, #tpu.memory_space<vmem>>, vector<1x128x32xbf16>
    %9 = vector.shape_cast %8 : vector<1x128x32xbf16> to vector<128x32xbf16>
    %cst = arith.constant dense<0.000000e+00> : vector<8x32xf32>
    %10 = tpu.matmul %1, %9, %cst {dimension_numbers = #tpu.dot_dimension_numbers<[1], [0], [0], [1], [0, 0, 1, 1], [], []>} : vector<8x128xbf16>, vector<128x32xbf16>, vector<8x32xf32> -> vector<8x32xf32>
    %c0_14 = arith.constant 0 : index
    %c0_15 = arith.constant 0 : index
    %c0_16 = arith.constant 0 : index
    %11 = vector.load %arg11[%c0_14, %c0_15, %c0_16] : memref<1x1x32xf32, #tpu.memory_space<vmem>>, vector<1x1x32xf32>
    %12 = vector.shape_cast %11 : vector<1x1x32xf32> to vector<1x32xf32>
    %13 = vector.broadcast %12 : vector<1x32xf32> to vector<8x32xf32>
    %14 = arith.addf %10, %13 : vector<8x32xf32>
    %c0_17 = arith.constant 0 : index
    %c0_18 = arith.constant 0 : index
    %c0_19 = arith.constant 0 : index
    %15 = vector.load %arg7[%c0_17, %c0_18, %c0_19] : memref<1x128x32xbf16, #tpu.memory_space<vmem>>, vector<1x128x32xbf16>
    %16 = vector.shape_cast %15 : vector<1x128x32xbf16> to vector<128x32xbf16>
    %cst_20 = arith.constant dense<0.000000e+00> : vector<8x32xf32>
    %17 = tpu.matmul %3, %16, %cst_20 {dimension_numbers = #tpu.dot_dimension_numbers<[1], [0], [0], [1], [0, 0, 1, 1], [], []>} : vector<8x128xbf16>, vector<128x32xbf16>, vector<8x32xf32> -> vector<8x32xf32>
    %c0_21 = arith.constant 0 : index
    %c0_22 = arith.constant 0 : index
    %c0_23 = arith.constant 0 : index
    %18 = vector.load %arg12[%c0_21, %c0_22, %c0_23] : memref<1x1x32xf32, #tpu.memory_space<vmem>>, vector<1x1x32xf32>
    %19 = vector.shape_cast %18 : vector<1x1x32xf32> to vector<1x32xf32>
    %20 = vector.broadcast %19 : vector<1x32xf32> to vector<8x32xf32>
    %21 = arith.addf %17, %20 : vector<8x32xf32>
    %c0_24 = arith.constant 0 : index
    %c0_25 = arith.constant 0 : index
    %c0_26 = arith.constant 0 : index
    %22 = vector.load %arg8[%c0_24, %c0_25, %c0_26] : memref<1x128x32xbf16, #tpu.memory_space<vmem>>, vector<1x128x32xbf16>
    %23 = vector.shape_cast %22 : vector<1x128x32xbf16> to vector<128x32xbf16>
    %cst_27 = arith.constant dense<0.000000e+00> : vector<8x32xf32>
    %24 = tpu.matmul %5, %23, %cst_27 {dimension_numbers = #tpu.dot_dimension_numbers<[1], [0], [0], [1], [0, 0, 1, 1], [], []>} : vector<8x128xbf16>, vector<128x32xbf16>, vector<8x32xf32> -> vector<8x32xf32>
    %c0_28 = arith.constant 0 : index
    %c0_29 = arith.constant 0 : index
    %c0_30 = arith.constant 0 : index
    %25 = vector.load %arg13[%c0_28, %c0_29, %c0_30] : memref<1x1x32xf32, #tpu.memory_space<vmem>>, vector<1x1x32xf32>
    %26 = vector.shape_cast %25 : vector<1x1x32xf32> to vector<1x32xf32>
    %27 = vector.broadcast %26 : vector<1x32xf32> to vector<8x32xf32>
    %28 = arith.addf %24, %27 : vector<8x32xf32>
    %c0_31 = arith.constant 0 : index
    %c0_32 = arith.constant 0 : index
    %c0_33 = arith.constant 0 : index
    %29 = vector.load %arg9[%c0_31, %c0_32, %c0_33] : memref<1x128x32xbf16, #tpu.memory_space<vmem>>, vector<1x128x32xbf16>
    %30 = vector.shape_cast %29 : vector<1x128x32xbf16> to vector<128x32xbf16>
    %cst_34 = arith.constant dense<0.000000e+00> : vector<8x32xf32>
    %31 = tpu.matmul %7, %30, %cst_34 {dimension_numbers = #tpu.dot_dimension_numbers<[1], [0], [0], [1], [0, 0, 1, 1], [], []>} : vector<8x128xbf16>, vector<128x32xbf16>, vector<8x32xf32> -> vector<8x32xf32>
    %c0_35 = arith.constant 0 : index
    %c0_36 = arith.constant 0 : index
    %c0_37 = arith.constant 0 : index
    %32 = vector.load %arg15[%c0_35, %c0_36, %c0_37] : memref<1x1x32xf32, #tpu.memory_space<vmem>>, vector<1x1x32xf32>
    %33 = vector.shape_cast %32 : vector<1x1x32xf32> to vector<1x32xf32>
    %34 = vector.broadcast %33 : vector<1x32xf32> to vector<8x32xf32>
    %35 = arith.addf %14, %34 : vector<8x32xf32>
    %cst_38 = arith.constant 0.0883883461 : f32
    %36 = vector.broadcast %cst_38 : f32 to vector<8x32xf32>
    %37 = arith.mulf %35, %36 : vector<8x32xf32>
    %38 = arith.truncf %37 : vector<8x32xf32> to vector<8x32xbf16>
    %c0_39 = arith.constant 0 : index
    %c0_40 = arith.constant 0 : index
    %c0_41 = arith.constant 0 : index
    %39 = vector.load %arg16[%c0_39, %c0_40, %c0_41] : memref<1x1x32xf32, #tpu.memory_space<vmem>>, vector<1x1x32xf32>
    %40 = vector.shape_cast %39 : vector<1x1x32xf32> to vector<1x32xf32>
    %41 = vector.broadcast %40 : vector<1x32xf32> to vector<8x32xf32>
    %42 = arith.addf %14, %41 : vector<8x32xf32>
    %cst_42 = arith.constant 0.0883883461 : f32
    %43 = vector.broadcast %cst_42 : f32 to vector<8x32xf32>
    %44 = arith.mulf %42, %43 : vector<8x32xf32>
    %45 = arith.truncf %44 : vector<8x32xf32> to vector<8x32xbf16>
    %46 = arith.truncf %21 : vector<8x32xf32> to vector<8x32xbf16>
    %47 = arith.truncf %31 : vector<8x32xf32> to vector<8x32xbf16>
    "tpu.trace_start"() <{level = 10 : i32, message = "td,sd->ts"}> : () -> ()
    %cst_43 = arith.constant dense<0.000000e+00> : vector<8x8xf32>
    %48 = tpu.matmul %38, %46, %cst_43 {dimension_numbers = #tpu.dot_dimension_numbers<[1], [1], [0], [0], [0, 0, 1, 0], [], []>} : vector<8x32xbf16>, vector<8x32xbf16>, vector<8x8xf32> -> vector<8x8xf32>
    %cst_44 = arith.constant dense<0.000000e+00> : vector<8x8xf32>
    %49 = tpu.matmul %45, %47, %cst_44 {dimension_numbers = #tpu.dot_dimension_numbers<[1], [1], [0], [0], [0, 0, 1, 0], [], []>} : vector<8x32xbf16>, vector<8x32xbf16>, vector<8x8xf32> -> vector<8x8xf32>
    "tpu.trace_stop"() : () -> ()
    %50 = tpu.iota {dimensions = array<i32: 0>} : vector<8x8xi32>
    %51 = tpu.iota {dimensions = array<i32: 1>} : vector<8x8xi32>
    %52 = vector.extract_strided_slice %49 {offsets = [0, 7], sizes = [8, 1], strides = [1, 1]} : vector<8x8xf32> to vector<8x1xf32>
    %53 = vector.extract_strided_slice %49 {offsets = [0, 0], sizes = [8, 7], strides = [1, 1]} : vector<8x8xf32> to vector<8x7xf32>
    %54 = tpu.concatenate %52, %53 in 1 : vector<8x1xf32>, vector<8x7xf32> -> vector<8x8xf32>
    %55 = tpu.iota {dimensions = array<i32: 0>} : vector<8x8xi32>
    %c1_i32 = arith.constant 1 : i32
    %56 = vector.broadcast %c1_i32 : i32 to vector<8x8xi32>
    %57 = arith.andi %55, %56 : vector<8x8xi32>
    %c0_i32 = arith.constant 0 : i32
    %58 = vector.broadcast %c0_i32 : i32 to vector<8x8xi32>
    %59 = arith.cmpi ne, %57, %58 : vector<8x8xi32>
    %60 = vector.extract_strided_slice %54 {offsets = [0, 7], sizes = [8, 1], strides = [1, 1]} : vector<8x8xf32> to vector<8x1xf32>
    %61 = vector.extract_strided_slice %54 {offsets = [0, 0], sizes = [8, 7], strides = [1, 1]} : vector<8x8xf32> to vector<8x7xf32>
    %62 = tpu.concatenate %60, %61 in 1 : vector<8x1xf32>, vector<8x7xf32> -> vector<8x8xf32>
    %63 = arith.select %59, %62, %54 : vector<8x8xi1>, vector<8x8xf32>
    %c2_i32 = arith.constant 2 : i32
    %64 = vector.broadcast %c2_i32 : i32 to vector<8x8xi32>
    %65 = arith.andi %55, %64 : vector<8x8xi32>
    %c0_i32_45 = arith.constant 0 : i32
    %66 = vector.broadcast %c0_i32_45 : i32 to vector<8x8xi32>
    %67 = arith.cmpi ne, %65, %66 : vector<8x8xi32>
    %68 = vector.extract_strided_slice %63 {offsets = [0, 6], sizes = [8, 2], strides = [1, 1]} : vector<8x8xf32> to vector<8x2xf32>
    %69 = vector.extract_strided_slice %63 {offsets = [0, 0], sizes = [8, 6], strides = [1, 1]} : vector<8x8xf32> to vector<8x6xf32>
    %70 = tpu.concatenate %68, %69 in 1 : vector<8x2xf32>, vector<8x6xf32> -> vector<8x8xf32>
    %71 = arith.select %67, %70, %63 : vector<8x8xi1>, vector<8x8xf32>
    %c4_i32 = arith.constant 4 : i32
    %72 = vector.broadcast %c4_i32 : i32 to vector<8x8xi32>
    %73 = arith.andi %55, %72 : vector<8x8xi32>
    %c0_i32_46 = arith.constant 0 : i32
    %74 = vector.broadcast %c0_i32_46 : i32 to vector<8x8xi32>
    %75 = arith.cmpi ne, %73, %74 : vector<8x8xi32>
    %76 = vector.extract_strided_slice %71 {offsets = [0, 4], sizes = [8, 4], strides = [1, 1]} : vector<8x8xf32> to vector<8x4xf32>
    %77 = vector.extract_strided_slice %71 {offsets = [0, 0], sizes = [8, 4], strides = [1, 1]} : vector<8x8xf32> to vector<8x4xf32>
    %78 = tpu.concatenate %76, %77 in 1 : vector<8x4xf32>, vector<8x4xf32> -> vector<8x8xf32>
    %79 = arith.select %75, %78, %71 : vector<8x8xi1>, vector<8x8xf32>
    %80 = vector.extract_strided_slice %49 {offsets = [1, 0], sizes = [7, 8], strides = [1, 1]} : vector<8x8xf32> to vector<7x8xf32>
    %81 = vector.extract_strided_slice %49 {offsets = [0, 0], sizes = [1, 8], strides = [1, 1]} : vector<8x8xf32> to vector<1x8xf32>
    %82 = tpu.concatenate %80, %81 in 0 : vector<7x8xf32>, vector<1x8xf32> -> vector<8x8xf32>
    %83 = vector.extract_strided_slice %82 {offsets = [0, 6], sizes = [8, 2], strides = [1, 1]} : vector<8x8xf32> to vector<8x2xf32>
    %84 = vector.extract_strided_slice %82 {offsets = [0, 0], sizes = [8, 6], strides = [1, 1]} : vector<8x8xf32> to vector<8x6xf32>
    %85 = tpu.concatenate %83, %84 in 1 : vector<8x2xf32>, vector<8x6xf32> -> vector<8x8xf32>
    %86 = tpu.iota {dimensions = array<i32: 0>} : vector<8x8xi32>
    %c1_i32_47 = arith.constant 1 : i32
    %87 = vector.broadcast %c1_i32_47 : i32 to vector<8x8xi32>
    %88 = arith.andi %86, %87 : vector<8x8xi32>
    %c0_i32_48 = arith.constant 0 : i32
    %89 = vector.broadcast %c0_i32_48 : i32 to vector<8x8xi32>
    %90 = arith.cmpi ne, %88, %89 : vector<8x8xi32>
    %91 = vector.extract_strided_slice %85 {offsets = [0, 7], sizes = [8, 1], strides = [1, 1]} : vector<8x8xf32> to vector<8x1xf32>
    %92 = vector.extract_strided_slice %85 {offsets = [0, 0], sizes = [8, 7], strides = [1, 1]} : vector<8x8xf32> to vector<8x7xf32>
    %93 = tpu.concatenate %91, %92 in 1 : vector<8x1xf32>, vector<8x7xf32> -> vector<8x8xf32>
    %94 = arith.select %90, %93, %85 : vector<8x8xi1>, vector<8x8xf32>
    %c2_i32_49 = arith.constant 2 : i32
    %95 = vector.broadcast %c2_i32_49 : i32 to vector<8x8xi32>
    %96 = arith.andi %86, %95 : vector<8x8xi32>
    %c0_i32_50 = arith.constant 0 : i32
    %97 = vector.broadcast %c0_i32_50 : i32 to vector<8x8xi32>
    %98 = arith.cmpi ne, %96, %97 : vector<8x8xi32>
    %99 = vector.extract_strided_slice %94 {offsets = [0, 6], sizes = [8, 2], strides = [1, 1]} : vector<8x8xf32> to vector<8x2xf32>
    %100 = vector.extract_strided_slice %94 {offsets = [0, 0], sizes = [8, 6], strides = [1, 1]} : vector<8x8xf32> to vector<8x6xf32>
    %101 = tpu.concatenate %99, %100 in 1 : vector<8x2xf32>, vector<8x6xf32> -> vector<8x8xf32>
    %102 = arith.select %98, %101, %94 : vector<8x8xi1>, vector<8x8xf32>
    %c4_i32_51 = arith.constant 4 : i32
    %103 = vector.broadcast %c4_i32_51 : i32 to vector<8x8xi32>
    %104 = arith.andi %86, %103 : vector<8x8xi32>
    %c0_i32_52 = arith.constant 0 : i32
    %105 = vector.broadcast %c0_i32_52 : i32 to vector<8x8xi32>
    %106 = arith.cmpi ne, %104, %105 : vector<8x8xi32>
    %107 = vector.extract_strided_slice %102 {offsets = [0, 4], sizes = [8, 4], strides = [1, 1]} : vector<8x8xf32> to vector<8x4xf32>
    %108 = vector.extract_strided_slice %102 {offsets = [0, 0], sizes = [8, 4], strides = [1, 1]} : vector<8x8xf32> to vector<8x4xf32>
    %109 = tpu.concatenate %107, %108 in 1 : vector<8x4xf32>, vector<8x4xf32> -> vector<8x8xf32>
    %110 = arith.select %106, %109, %102 : vector<8x8xi1>, vector<8x8xf32>
    %cst_53 = arith.constant 0.000000e+00 : f32
    %111 = vector.broadcast %cst_53 : f32 to vector<8x8xf32>
    %112 = arith.cmpi sle, %51, %50 : vector<8x8xi32>
    %c1_i32_54 = arith.constant 1 : i32
    %113 = vector.broadcast %c1_i32_54 : i32 to vector<8x8xi32>
    %114 = arith.addi %50, %113 : vector<8x8xi32>
    %115 = arith.cmpi eq, %51, %114 : vector<8x8xi32>
    %116 = arith.select %115, %111, %110 : vector<8x8xi1>, vector<8x8xf32>
    %117 = arith.select %112, %79, %116 : vector<8x8xi1>, vector<8x8xf32>
    %118 = arith.addf %48, %117 : vector<8x8xf32>
    %cst_55 = arith.constant dense<0xFF800000> : vector<8xf32>
    %119 = vector.multi_reduction <maximumf>, %118, %cst_55 [1] : vector<8x8xf32> to vector<8xf32>
    %120 = vector.shape_cast %119 : vector<8xf32> to vector<8x1xf32>
    %121 = vector.broadcast %120 : vector<8x1xf32> to vector<8x8xf32>
    %122 = arith.subf %118, %121 : vector<8x8xf32>
    %123 = math.exp %122 : vector<8x8xf32>
    %cst_56 = arith.constant dense<0.000000e+00> : vector<8xf32>
    %124 = vector.multi_reduction <add>, %123, %cst_56 [1] : vector<8x8xf32> to vector<8xf32>
    %125 = vector.shape_cast %124 : vector<8xf32> to vector<8x1xf32>
    %126 = tpu.reciprocal %125 {approx = true} : vector<8x1xf32> -> vector<8x1xf32>
    %127 = vector.broadcast %126 : vector<8x1xf32> to vector<8x8xf32>
    %128 = arith.mulf %123, %127 : vector<8x8xf32>
    %129 = arith.truncf %128 : vector<8x8xf32> to vector<8x8xbf16>
    %130 = arith.truncf %28 : vector<8x32xf32> to vector<8x32xbf16>
    %cst_57 = arith.constant dense<0.000000e+00> : vector<8x32xf32>
    %131 = tpu.matmul %129, %130, %cst_57 {dimension_numbers = #tpu.dot_dimension_numbers<[1], [0], [0], [1], [0, 0, 1, 1], [], []>} : vector<8x8xbf16>, vector<8x32xbf16>, vector<8x32xf32> -> vector<8x32xf32>
    %132 = arith.truncf %131 : vector<8x32xf32> to vector<8x32xbf16>
    %c0_58 = arith.constant 0 : index
    %c0_59 = arith.constant 0 : index
    %c0_60 = arith.constant 0 : index
    %133 = vector.load %arg10[%c0_58, %c0_59, %c0_60] : memref<1x32x128xbf16, #tpu.memory_space<vmem>>, vector<1x32x128xbf16>
    %134 = vector.shape_cast %133 : vector<1x32x128xbf16> to vector<32x128xbf16>
    %cst_61 = arith.constant dense<0.000000e+00> : vector<8x128xf32>
    %135 = tpu.matmul %132, %134, %cst_61 {dimension_numbers = #tpu.dot_dimension_numbers<[1], [0], [0], [1], [0, 0, 1, 1], [], []>} : vector<8x32xbf16>, vector<32x128xbf16>, vector<8x128xf32> -> vector<8x128xf32>
    %c0_i32_62 = arith.constant 0 : i32
    %136 = arith.cmpi eq, %arg1, %c0_i32_62 : i32
    %137 = arith.extui %136 : i1 to i32
    %c0_i32_63 = arith.constant 0 : i32
    %138 = arith.cmpi ne, %137, %c0_i32_63 : i32
    scf.if %138 {
      %c0_66 = arith.constant 0 : index
      %c0_67 = arith.constant 0 : index
      %142 = vector.load %arg14[%c0_66, %c0_67] : memref<1x128xf32, #tpu.memory_space<vmem>>, vector<1x128xf32>
      %143 = vector.shape_cast %142 : vector<1x128xf32> to vector<128xf32>
      %144 = vector.shape_cast %143 : vector<128xf32> to vector<1x128xf32>
      %145 = vector.broadcast %144 : vector<1x128xf32> to vector<8x128xf32>
      %146 = arith.addf %135, %145 : vector<8x128xf32>
      %c0_68 = arith.constant 0 : index
      %c0_69 = arith.constant 0 : index
      %c0_70 = arith.constant 0 : index
      %147 = vector.load %arg17[%c0_68, %c0_69, %c0_70] : memref<1x8x128xf32, #tpu.memory_space<vmem>>, vector<1x8x128xf32>
      %148 = vector.shape_cast %147 : vector<1x8x128xf32> to vector<8x128xf32>
      %149 = vector.shape_cast %146 : vector<8x128xf32> to vector<1x8x128xf32>
      tpu.vector_store %arg17[%c0_68, %c0_69, %c0_70], %149 {strides = array<i32>} : memref<1x8x128xf32, #tpu.memory_space<vmem>>, vector<1x8x128xf32>,
    } else {
    }
    %c0_i32_64 = arith.constant 0 : i32
    %139 = arith.cmpi ne, %arg1, %c0_i32_64 : i32
    %140 = arith.extui %139 : i1 to i32
    %c0_i32_65 = arith.constant 0 : i32
    %141 = arith.cmpi ne, %140, %c0_i32_65 : i32
    scf.if %141 {
      %c0_66 = arith.constant 0 : index
      %c0_67 = arith.constant 0 : index
      %c0_68 = arith.constant 0 : index
      %142 = vector.load %arg17[%c0_66, %c0_67, %c0_68] : memref<1x8x128xf32, #tpu.memory_space<vmem>>, vector<1x8x128xf32>
      %143 = vector.shape_cast %142 : vector<1x8x128xf32> to vector<8x128xf32>
      %144 = arith.addf %143, %135 : vector<8x128xf32>
      %c0_69 = arith.constant 0 : index
      %c0_70 = arith.constant 0 : index
      %c0_71 = arith.constant 0 : index
      %145 = vector.load %arg17[%c0_69, %c0_70, %c0_71] : memref<1x8x128xf32, #tpu.memory_space<vmem>>, vector<1x8x128xf32>
      %146 = vector.shape_cast %145 : vector<1x8x128xf32> to vector<8x128xf32>
      %147 = vector.shape_cast %144 : vector<8x128xf32> to vector<1x8x128xf32>
      tpu.vector_store %arg17[%c0_69, %c0_70, %c0_71], %147 {strides = array<i32>} : memref<1x8x128xf32, #tpu.memory_space<vmem>>, vector<1x8x128xf32>,
    } else {
    }
    return
  }
  func.func @transform_0(%arg0: i32, %arg1: i32) -> (i32, i32, i32) {
    %c0_i32 = arith.constant 0 : i32
    %c0_i32_0 = arith.constant 0 : i32
    %c0_i32_1 = arith.constant 0 : i32
    return %arg0, %c0_i32, %c0_i32_0 : i32, i32, i32
  }
  func.func @transform_1(%arg0: i32, %arg1: i32) -> (i32, i32, i32) {
    %c0_i32 = arith.constant 0 : i32
    %c0_i32_0 = arith.constant 0 : i32
    %c0_i32_1 = arith.constant 0 : i32
    return %arg0, %c0_i32, %c0_i32_0 : i32, i32, i32
  }
  func.func @transform_2(%arg0: i32, %arg1: i32) -> (i32, i32, i32) {
    %c0_i32 = arith.constant 0 : i32
    %c0_i32_0 = arith.constant 0 : i32
    %c0_i32_1 = arith.constant 0 : i32
    return %arg0, %c0_i32, %c0_i32_0 : i32, i32, i32
  }
  func.func @transform_3(%arg0: i32, %arg1: i32) -> (i32, i32, i32) {
    %c0_i32 = arith.constant 0 : i32
    %c0_i32_0 = arith.constant 0 : i32
    %c0_i32_1 = arith.constant 0 : i32
    return %arg0, %c0_i32, %c0_i32_0 : i32, i32, i32
  }
  func.func @transform_4(%arg0: i32, %arg1: i32) -> (i32, i32, i32) {
    %c0_i32 = arith.constant 0 : i32
    %c0_i32_0 = arith.constant 0 : i32
    %c0_i32_1 = arith.constant 0 : i32
    return %arg1, %c0_i32, %c0_i32_0 : i32, i32, i32
  }
  func.func @transform_5(%arg0: i32, %arg1: i32) -> (i32, i32, i32) {
    %c0_i32 = arith.constant 0 : i32
    %c0_i32_0 = arith.constant 0 : i32
    %c0_i32_1 = arith.constant 0 : i32
    return %arg1, %c0_i32, %c0_i32_0 : i32, i32, i32
  }
  func.func @transform_6(%arg0: i32, %arg1: i32) -> (i32, i32, i32) {
    %c0_i32 = arith.constant 0 : i32
    %c0_i32_0 = arith.constant 0 : i32
    %c0_i32_1 = arith.constant 0 : i32
    return %arg1, %c0_i32, %c0_i32_0 : i32, i32, i32
  }
  func.func @transform_7(%arg0: i32, %arg1: i32) -> (i32, i32, i32) {
    %c0_i32 = arith.constant 0 : i32
    %c0_i32_0 = arith.constant 0 : i32
    %c0_i32_1 = arith.constant 0 : i32
    return %arg1, %c0_i32, %c0_i32_0 : i32, i32, i32
  }
  func.func @transform_8(%arg0: i32, %arg1: i32) -> (i32, i32, i32) {
    %c0_i32 = arith.constant 0 : i32
    %c0_i32_0 = arith.constant 0 : i32
    %c0_i32_1 = arith.constant 0 : i32
    return %arg1, %c0_i32, %c0_i32_0 : i32, i32, i32
  }
  func.func @transform_9(%arg0: i32, %arg1: i32) -> (i32, i32, i32) {
    %c0_i32 = arith.constant 0 : i32
    %c0_i32_0 = arith.constant 0 : i32
    %c0_i32_1 = arith.constant 0 : i32
    return %arg1, %c0_i32, %c0_i32_0 : i32, i32, i32
  }
  func.func @transform_10(%arg0: i32, %arg1: i32) -> (i32, i32, i32) {
    %c0_i32 = arith.constant 0 : i32
    %c0_i32_0 = arith.constant 0 : i32
    %c0_i32_1 = arith.constant 0 : i32
    return %arg1, %c0_i32, %c0_i32_0 : i32, i32, i32
  }
  func.func @transform_11(%arg0: i32, %arg1: i32) -> (i32, i32, i32) {
    %c0_i32 = arith.constant 0 : i32
    %c0_i32_0 = arith.constant 0 : i32
    %c0_i32_1 = arith.constant 0 : i32
    return %arg1, %c0_i32, %c0_i32_0 : i32, i32, i32
  }
  func.func @transform_12(%arg0: i32, %arg1: i32) -> (i32, i32) {
    %c0_i32 = arith.constant 0 : i32
    %c0_i32_0 = arith.constant 0 : i32
    %c0_i32_1 = arith.constant 0 : i32
    return %c0_i32, %c0_i32_0 : i32, i32
  }
  func.func @transform_13(%arg0: i32, %arg1: i32) -> (i32, i32, i32) {
    %c0_i32 = arith.constant 0 : i32
    %c0_i32_0 = arith.constant 0 : i32
    %c0_i32_1 = arith.constant 0 : i32
    return %arg1, %c0_i32, %c0_i32_0 : i32, i32, i32
  }
  func.func @transform_14(%arg0: i32, %arg1: i32) -> (i32, i32, i32) {
    %c0_i32 = arith.constant 0 : i32
    %c0_i32_0 = arith.constant 0 : i32
    %c0_i32_1 = arith.constant 0 : i32
    return %arg1, %c0_i32, %c0_i32_0 : i32, i32, i32
  }
  func.func @transform_15(%arg0: i32, %arg1: i32) -> (i32, i32, i32) {
    %c0_i32 = arith.constant 0 : i32
    %c0_i32_0 = arith.constant 0 : i32
    %c0_i32_1 = arith.constant 0 : i32
    return %arg0, %c0_i32, %c0_i32_0 : i32, i32, i32
  }
}

</mosaic_0001>

<llo_original>
// kernel: tpu_custom_call.1
$region0: #{tpu_custom_call.1}
  #allocation0 [shape = 'u32[]', space=smem, size = 0x4, offset = 0x4, fixed_abs, tag = 'smem constant byte address 0x4 - core index']
  #allocation1 [shape = 'u32[144,128]{1,0:T(1,128)}', space=vmem, size = 0x12000, scoped, tag = 'internal scratch']
  %s0 = inlined_call_operand.vmem [shape: bf16[2,8,128], index: 0, kind: input, shape index: {}]
  %s1 = inlined_call_operand.vmem [shape: bf16[2,8,128], index: 1, kind: input, shape index: {}]
  %s2 = inlined_call_operand.vmem [shape: bf16[2,8,128], index: 2, kind: input, shape index: {}]
  %s3 = inlined_call_operand.vmem [shape: bf16[2,8,128], index: 3, kind: input, shape index: {}]
  %s4 = inlined_call_operand.vmem [shape: bf16[4,128,32], index: 4, kind: input, shape index: {}]
  %s5 = inlined_call_operand.vmem [shape: bf16[4,128,32], index: 5, kind: input, shape index: {}]
  %s6 = inlined_call_operand.vmem [shape: bf16[4,128,32], index: 6, kind: input, shape index: {}]
  %s7 = inlined_call_operand.vmem [shape: bf16[4,128,32], index: 7, kind: input, shape index: {}]
  %s8 = inlined_call_operand.vmem [shape: bf16[4,32,128], index: 8, kind: input, shape index: {}]
  %s9 = inlined_call_operand.vmem [shape: f32[4,1,32], index: 9, kind: input, shape index: {}]
  %s10 = inlined_call_operand.vmem [shape: f32[4,1,32], index: 10, kind: input, shape index: {}]
  %s11 = inlined_call_operand.vmem [shape: f32[4,1,32], index: 11, kind: input, shape index: {}]
  %s12 = inlined_call_operand.vmem [shape: f32[1,128], index: 12, kind: input, shape index: {}]
  %s13 = inlined_call_operand.vmem [shape: f32[4,1,32], index: 13, kind: input, shape index: {}]
  %s14 = inlined_call_operand.vmem [shape: f32[4,1,32], index: 14, kind: input, shape index: {}]
  %s15 = inlined_call_operand.hbm [shape: f32[2,8,128], index: 15, kind: output, shape index: {}]
  %s16 = sld [smem:[#allocation0]]
  $region101: #{tpu_custom_call.1} parent=0
    _
  %s18 = ssub.s32 1, %s16
  %s19 = scalar_select 0, %s18, %s16
  $region1: #{tpu_custom_call.1} parent=0
    #allocation2 [shape = 'u8[8192]{0}', space=vmem, size = 0x2000, scoped, tag = 'output window, operand 0']
    #allocation3 [shape = 's32[2]{0}', space=sflag, size = 0x8, scoped, tag = 'scoped memory for tpu_custom_call.1']
    %20 = vsyncpa [#allocation3], 0
    %s21 = scalar_lea.sflag [#allocation3], 1
    %22 = vsyncpa %s21, 0
    loop: start=0, step=1, limit=10
    $region2: #{tpu_custom_call.1} parent=1 // loop_pre_header
      _
    $region3: #{tpu_custom_call.1} parent=1 // loop_header
      %s24 = sphi 0, %s28
      %p25 = scmp.ge.s32.totalorder %s24, 10
      %s31 = sphi 0, %s43
      %s32 = sphi 0, %s39
      %s33 = sphi 0, %s31
      %s34 = sphi 0, %s32
      %s35 = sphi 0, %s33
      %s36 = sphi 0, %s34
      %s46 = sphi 0, %s48
      %s49 = sphi 0, %s46
      %s50 = sphi 0, %s49
      %s66 = sphi 0, %s50
      %s72 = sphi 0, %s74
      %s75 = sphi 0, %s72
      %s76 = sphi 0, %s75
      %s92 = sphi 0, %s76
      %s98 = sphi 0, %s100
      %s101 = sphi 0, %s98
      %s102 = sphi 0, %s101
      %s118 = sphi 0, %s102
      %s124 = sphi 0, %s126
      %s127 = sphi 0, %s124
      %s128 = sphi 0, %s127
      %s144 = sphi 0, %s128
      %s150 = sphi 0, %s152
      %s153 = sphi 0, %s150
      %s154 = sphi 0, %s153
      %s170 = sphi 0, %s154
      %s176 = sphi 0, %s178
      %s179 = sphi 0, %s176
      %s180 = sphi 0, %s179
      %s196 = sphi 0, %s180
      %s202 = sphi 0, %s204
      %s205 = sphi 0, %s202
      %s206 = sphi 0, %s205
      %s222 = sphi 0, %s206
      %s228 = sphi 0, %s230
      %s231 = sphi 0, %s228
      %s232 = sphi 0, %s231
      %s248 = sphi 0, %s232
      %s254 = sphi 0, %s256
      %s257 = sphi 0, %s254
      %s258 = sphi 0, %s257
      %s274 = sphi 0, %s258
      %s280 = sphi 0, %s282
      %s283 = sphi 0, %s280
      %s284 = sphi 0, %s283
      %s300 = sphi 0, %s284
      %s306 = sphi 0, %s308
      %s309 = sphi 0, %s306
      %s310 = sphi 0, %s309
      %s326 = sphi 0, %s310
      %s332 = sphi 0, %s334
      %s335 = sphi 0, %s332
      %s336 = sphi 0, %s335
      %s352 = sphi 0, %s336
      %s356 = sphi 0, %s356
      %s358 = sphi 0, %s356
      %s359 = sphi 0, %s358
      %s373 = sphi 0, %s359
      %s379 = sphi 0, %s381
      %s382 = sphi 0, %s379
      %s383 = sphi 0, %s382
      %s399 = sphi 0, %s383
      %s405 = sphi 0, %s407
      %s408 = sphi 0, %s405
      %s409 = sphi 0, %s408
      %s425 = sphi 0, %s409
      %s431 = sphi 0, %s433
      %s434 = sphi 0, %s431
      %s435 = sphi 0, %s434
      %s451 = sphi 0, %s435
    $region4: #{tpu_custom_call.1} parent=1 // loop_header_branch
      %27 = sbr.rel (%p25) target = $region8
    $region5: #{tpu_custom_call.1} parent=1 // loop_body
      %s29 = ssub.s32 %s24, 1
      %s30 = ssub.s32 %s24, 2
      %s37 = sadd.s32 1, %s32
      %p38 = scmp.ge.s32.totalorder %s37, 4
      %s39 = scalar_select %p38, 0, %s37
      %s40 = sadd.s32 1, %s31
      %s41 = scalar_select %p38, %s40, %s31
      %p42 = scmp.ge.s32.totalorder %s41, 2
      %s43 = scalar_select %p42, 0, %s41
      %s44 = ssub.s32 %s31, %s43
      %p45 = scmp.eq.s32.totalorder %s44, 0
      %s47 = sadd.s32 %s46, 1
      %s48 = scalar_select %p45, %s46, %s47
      %p51 = pneg %p45
      %p52 = scmp.eq.s32.totalorder %s24, 7
      %p53 = por %p51, %p52
      %p54 = scmp.ne.s32.totalorder %s46, %s49
      %p55 = scmp.eq.s32.totalorder %s24, 0
      %p56 = por %p54, %p55
      %p57 = scmp.ne.s32.totalorder %s46, %s49
      %p58 = scmp.eq.s32.totalorder %s29, 7
      %p59 = por %p57, %p58
      %p60 = scmp.ne.s32.totalorder %s49, %s50
      %p61 = scmp.eq.s32.totalorder %s29, 0
      %p62 = por %p60, %p61
      %p63 = scmp.ne.s32.totalorder %s49, %s50
      %p64 = scmp.eq.s32.totalorder %s30, 7
      %p65 = por %p63, %p64
      %p67 = scmp.ne.s32.totalorder %s50, %s66
      %p68 = scmp.eq.s32.totalorder %s30, 0
      %p69 = por %p67, %p68
      %s70 = ssub.s32 %s31, %s43
      %p71 = scmp.eq.s32.totalorder %s70, 0
      %s73 = sadd.s32 %s72, 1
      %s74 = scalar_select %p71, %s72, %s73
      %p77 = pneg %p71
      %p78 = scmp.eq.s32.totalorder %s24, 7
      %p79 = por %p77, %p78
      %p80 = scmp.ne.s32.totalorder %s72, %s75
      %p81 = scmp.eq.s32.totalorder %s24, 0
      %p82 = por %p80, %p81
      %p83 = scmp.ne.s32.totalorder %s72, %s75
      %p84 = scmp.eq.s32.totalorder %s29, 7
      %p85 = por %p83, %p84
      %p86 = scmp.ne.s32.totalorder %s75, %s76
      %p87 = scmp.eq.s32.totalorder %s29, 0
      %p88 = por %p86, %p87
      %p89 = scmp.ne.s32.totalorder %s75, %s76
      %p90 = scmp.eq.s32.totalorder %s30, 7
      %p91 = por %p89, %p90
      %p93 = scmp.ne.s32.totalorder %s76, %s92
      %p94 = scmp.eq.s32.totalorder %s30, 0
      %p95 = por %p93, %p94
      %s96 = ssub.s32 %s31, %s43
      %p97 = scmp.eq.s32.totalorder %s96, 0
      %s99 = sadd.s32 %s98, 1
      %s100 = scalar_select %p97, %s98, %s99
      %p103 = pneg %p97
      %p104 = scmp.eq.s32.totalorder %s24, 7
      %p105 = por %p103, %p104
      %p106 = scmp.ne.s32.totalorder %s98, %s101
      %p107 = scmp.eq.s32.totalorder %s24, 0
      %p108 = por %p106, %p107
      %p109 = scmp.ne.s32.totalorder %s98, %s101
      %p110 = scmp.eq.s32.totalorder %s29, 7
      %p111 = por %p109, %p110
      %p112 = scmp.ne.s32.totalorder %s101, %s102
      %p113 = scmp.eq.s32.totalorder %s29, 0
      %p114 = por %p112, %p113
      %p115 = scmp.ne.s32.totalorder %s101, %s102
      %p116 = scmp.eq.s32.totalorder %s30, 7
      %p117 = por %p115, %p116
      %p119 = scmp.ne.s32.totalorder %s102, %s118
      %p120 = scmp.eq.s32.totalorder %s30, 0
      %p121 = por %p119, %p120
      %s122 = ssub.s32 %s31, %s43
      %p123 = scmp.eq.s32.totalorder %s122, 0
      %s125 = sadd.s32 %s124, 1
      %s126 = scalar_select %p123, %s124, %s125
      %p129 = pneg %p123
      %p130 = scmp.eq.s32.totalorder %s24, 7
      %p131 = por %p129, %p130
      %p132 = scmp.ne.s32.totalorder %s124, %s127
      %p133 = scmp.eq.s32.totalorder %s24, 0
      %p134 = por %p132, %p133
      %p135 = scmp.ne.s32.totalorder %s124, %s127
      %p136 = scmp.eq.s32.totalorder %s29, 7
      %p137 = por %p135, %p136
      %p138 = scmp.ne.s32.totalorder %s127, %s128
      %p139 = scmp.eq.s32.totalorder %s29, 0
      %p140 = por %p138, %p139
      %p141 = scmp.ne.s32.totalorder %s127, %s128
      %p142 = scmp.eq.s32.totalorder %s30, 7
      %p143 = por %p141, %p142
      %p145 = scmp.ne.s32.totalorder %s128, %s144
      %p146 = scmp.eq.s32.totalorder %s30, 0
      %p147 = por %p145, %p146
      %s148 = ssub.s32 %s32, %s39
      %p149 = scmp.eq.s32.totalorder %s148, 0
      %s151 = sadd.s32 %s150, 1
      %s152 = scalar_select %p149, %s150, %s151
      %p155 = pneg %p149
      %p156 = scmp.eq.s32.totalorder %s24, 7
      %p157 = por %p155, %p156
      %p158 = scmp.ne.s32.totalorder %s150, %s153
      %p159 = scmp.eq.s32.totalorder %s24, 0
      %p160 = por %p158, %p159
      %p161 = scmp.ne.s32.totalorder %s150, %s153
      %p162 = scmp.eq.s32.totalorder %s29, 7
      %p163 = por %p161, %p162
      %p164 = scmp.ne.s32.totalorder %s153, %s154
      %p165 = scmp.eq.s32.totalorder %s29, 0
      %p166 = por %p164, %p165
      %p167 = scmp.ne.s32.totalorder %s153, %s154
      %p168 = scmp.eq.s32.totalorder %s30, 7
      %p169 = por %p167, %p168
      %p171 = scmp.ne.s32.totalorder %s154, %s170
      %p172 = scmp.eq.s32.totalorder %s30, 0
      %p173 = por %p171, %p172
      %s174 = ssub.s32 %s32, %s39
      %p175 = scmp.eq.s32.totalorder %s174, 0
      %s177 = sadd.s32 %s176, 1
      %s178 = scalar_select %p175, %s176, %s177
      %p181 = pneg %p175
      %p182 = scmp.eq.s32.totalorder %s24, 7
      %p183 = por %p181, %p182
      %p184 = scmp.ne.s32.totalorder %s176, %s179
      %p185 = scmp.eq.s32.totalorder %s24, 0
      %p186 = por %p184, %p185
      %p187 = scmp.ne.s32.totalorder %s176, %s179
      %p188 = scmp.eq.s32.totalorder %s29, 7
      %p189 = por %p187, %p188
      %p190 = scmp.ne.s32.totalorder %s179, %s180
      %p191 = scmp.eq.s32.totalorder %s29, 0
      %p192 = por %p190, %p191
      %p193 = scmp.ne.s32.totalorder %s179, %s180
      %p194 = scmp.eq.s32.totalorder %s30, 7
      %p195 = por %p193, %p194
      %p197 = scmp.ne.s32.totalorder %s180, %s196
      %p198 = scmp.eq.s32.totalorder %s30, 0
      %p199 = por %p197, %p198
      %s200 = ssub.s32 %s32, %s39
      %p201 = scmp.eq.s32.totalorder %s200, 0
      %s203 = sadd.s32 %s202, 1
      %s204 = scalar_select %p201, %s202, %s203
      %p207 = pneg %p201
      %p208 = scmp.eq.s32.totalorder %s24, 7
      %p209 = por %p207, %p208
      %p210 = scmp.ne.s32.totalorder %s202, %s205
      %p211 = scmp.eq.s32.totalorder %s24, 0
      %p212 = por %p210, %p211
      %p213 = scmp.ne.s32.totalorder %s202, %s205
      %p214 = scmp.eq.s32.totalorder %s29, 7
      %p215 = por %p213, %p214
      %p216 = scmp.ne.s32.totalorder %s205, %s206
      %p217 = scmp.eq.s32.totalorder %s29, 0
      %p218 = por %p216, %p217
      %p219 = scmp.ne.s32.totalorder %s205, %s206
      %p220 = scmp.eq.s32.totalorder %s30, 7
      %p221 = por %p219, %p220
      %p223 = scmp.ne.s32.totalorder %s206, %s222
      %p224 = scmp.eq.s32.totalorder %s30, 0
      %p225 = por %p223, %p224
      %s226 = ssub.s32 %s32, %s39
      %p227 = scmp.eq.s32.totalorder %s226, 0
      %s229 = sadd.s32 %s228, 1
      %s230 = scalar_select %p227, %s228, %s229
      %p233 = pneg %p227
      %p234 = scmp.eq.s32.totalorder %s24, 7
      %p235 = por %p233, %p234
      %p236 = scmp.ne.s32.totalorder %s228, %s231
      %p237 = scmp.eq.s32.totalorder %s24, 0
      %p238 = por %p236, %p237
      %p239 = scmp.ne.s32.totalorder %s228, %s231
      %p240 = scmp.eq.s32.totalorder %s29, 7
      %p241 = por %p239, %p240
      %p242 = scmp.ne.s32.totalorder %s231, %s232
      %p243 = scmp.eq.s32.totalorder %s29, 0
      %p244 = por %p242, %p243
      %p245 = scmp.ne.s32.totalorder %s231, %s232
      %p246 = scmp.eq.s32.totalorder %s30, 7
      %p247 = por %p245, %p246
      %p249 = scmp.ne.s32.totalorder %s232, %s248
      %p250 = scmp.eq.s32.totalorder %s30, 0
      %p251 = por %p249, %p250
      %s252 = ssub.s32 %s32, %s39
      %p253 = scmp.eq.s32.totalorder %s252, 0
      %s255 = sadd.s32 %s254, 1
      %s256 = scalar_select %p253, %s254, %s255
      %p259 = pneg %p253
      %p260 = scmp.eq.s32.totalorder %s24, 7
      %p261 = por %p259, %p260
      %p262 = scmp.ne.s32.totalorder %s254, %s257
      %p263 = scmp.eq.s32.totalorder %s24, 0
      %p264 = por %p262, %p263
      %p265 = scmp.ne.s32.totalorder %s254, %s257
      %p266 = scmp.eq.s32.totalorder %s29, 7
      %p267 = por %p265, %p266
      %p268 = scmp.ne.s32.totalorder %s257, %s258
      %p269 = scmp.eq.s32.totalorder %s29, 0
      %p270 = por %p268, %p269
      %p271 = scmp.ne.s32.totalorder %s257, %s258
      %p272 = scmp.eq.s32.totalorder %s30, 7
      %p273 = por %p271, %p272
      %p275 = scmp.ne.s32.totalorder %s258, %s274
      %p276 = scmp.eq.s32.totalorder %s30, 0
      %p277 = por %p275, %p276
      %s278 = ssub.s32 %s32, %s39
      %p279 = scmp.eq.s32.totalorder %s278, 0
      %s281 = sadd.s32 %s280, 1
      %s282 = scalar_select %p279, %s280, %s281
      %p285 = pneg %p279
      %p286 = scmp.eq.s32.totalorder %s24, 7
      %p287 = por %p285, %p286
      %p288 = scmp.ne.s32.totalorder %s280, %s283
      %p289 = scmp.eq.s32.totalorder %s24, 0
      %p290 = por %p288, %p289
      %p291 = scmp.ne.s32.totalorder %s280, %s283
      %p292 = scmp.eq.s32.totalorder %s29, 7
      %p293 = por %p291, %p292
      %p294 = scmp.ne.s32.totalorder %s283, %s284
      %p295 = scmp.eq.s32.totalorder %s29, 0
      %p296 = por %p294, %p295
      %p297 = scmp.ne.s32.totalorder %s283, %s284
      %p298 = scmp.eq.s32.totalorder %s30, 7
      %p299 = por %p297, %p298
      %p301 = scmp.ne.s32.totalorder %s284, %s300
      %p302 = scmp.eq.s32.totalorder %s30, 0
      %p303 = por %p301, %p302
      %s304 = ssub.s32 %s32, %s39
      %p305 = scmp.eq.s32.totalorder %s304, 0
      %s307 = sadd.s32 %s306, 1
      %s308 = scalar_select %p305, %s306, %s307
      %p311 = pneg %p305
      %p312 = scmp.eq.s32.totalorder %s24, 7
      %p313 = por %p311, %p312
      %p314 = scmp.ne.s32.totalorder %s306, %s309
      %p315 = scmp.eq.s32.totalorder %s24, 0
      %p316 = por %p314, %p315
      %p317 = scmp.ne.s32.totalorder %s306, %s309
      %p318 = scmp.eq.s32.totalorder %s29, 7
      %p319 = por %p317, %p318
      %p320 = scmp.ne.s32.totalorder %s309, %s310
      %p321 = scmp.eq.s32.totalorder %s29, 0
      %p322 = por %p320, %p321
      %p323 = scmp.ne.s32.totalorder %s309, %s310
      %p324 = scmp.eq.s32.totalorder %s30, 7
      %p325 = por %p323, %p324
      %p327 = scmp.ne.s32.totalorder %s310, %s326
      %p328 = scmp.eq.s32.totalorder %s30, 0
      %p329 = por %p327, %p328
      %s330 = ssub.s32 %s32, %s39
      %p331 = scmp.eq.s32.totalorder %s330, 0
      %s333 = sadd.s32 %s332, 1
      %s334 = scalar_select %p331, %s332, %s333
      %p337 = pneg %p331
      %p338 = scmp.eq.s32.totalorder %s24, 7
      %p339 = por %p337, %p338
      %p340 = scmp.ne.s32.totalorder %s332, %s335
      %p341 = scmp.eq.s32.totalorder %s24, 0
      %p342 = por %p340, %p341
      %p343 = scmp.ne.s32.totalorder %s332, %s335
      %p344 = scmp.eq.s32.totalorder %s29, 7
      %p345 = por %p343, %p344
      %p346 = scmp.ne.s32.totalorder %s335, %s336
      %p347 = scmp.eq.s32.totalorder %s29, 0
      %p348 = por %p346, %p347
      %p349 = scmp.ne.s32.totalorder %s335, %s336
      %p350 = scmp.eq.s32.totalorder %s30, 7
      %p351 = por %p349, %p350
      %p353 = scmp.ne.s32.totalorder %s336, %s352
      %p354 = scmp.eq.s32.totalorder %s30, 0
      %p355 = por %p353, %p354
      %s357 = sadd.s32 %s356, 1
      %p360 = scmp.eq.s32.totalorder %s24, 7
      %p361 = scmp.ne.s32.totalorder %s356, %s358
      %p362 = scmp.eq.s32.totalorder %s24, 0
      %p363 = por %p361, %p362
      %p364 = scmp.ne.s32.totalorder %s356, %s358
      %p365 = scmp.eq.s32.totalorder %s29, 7
      %p366 = por %p364, %p365
      %p367 = scmp.ne.s32.totalorder %s358, %s359
      %p368 = scmp.eq.s32.totalorder %s29, 0
      %p369 = por %p367, %p368
      %p370 = scmp.ne.s32.totalorder %s358, %s359
      %p371 = scmp.eq.s32.totalorder %s30, 7
      %p372 = por %p370, %p371
      %p374 = scmp.ne.s32.totalorder %s359, %s373
      %p375 = scmp.eq.s32.totalorder %s30, 0
      %p376 = por %p374, %p375
      %s377 = ssub.s32 %s32, %s39
      %p378 = scmp.eq.s32.totalorder %s377, 0
      %s380 = sadd.s32 %s379, 1
      %s381 = scalar_select %p378, %s379, %s380
      %p384 = pneg %p378
      %p385 = scmp.eq.s32.totalorder %s24, 7
      %p386 = por %p384, %p385
      %p387 = scmp.ne.s32.totalorder %s379, %s382
      %p388 = scmp.eq.s32.totalorder %s24, 0
      %p389 = por %p387, %p388
      %p390 = scmp.ne.s32.totalorder %s379, %s382
      %p391 = scmp.eq.s32.totalorder %s29, 7
      %p392 = por %p390, %p391
      %p393 = scmp.ne.s32.totalorder %s382, %s383
      %p394 = scmp.eq.s32.totalorder %s29, 0
      %p395 = por %p393, %p394
      %p396 = scmp.ne.s32.totalorder %s382, %s383
      %p397 = scmp.eq.s32.totalorder %s30, 7
      %p398 = por %p396, %p397
      %p400 = scmp.ne.s32.totalorder %s383, %s399
      %p401 = scmp.eq.s32.totalorder %s30, 0
      %p402 = por %p400, %p401
      %s403 = ssub.s32 %s32, %s39
      %p404 = scmp.eq.s32.totalorder %s403, 0
      %s406 = sadd.s32 %s405, 1
      %s407 = scalar_select %p404, %s405, %s406
      %p410 = pneg %p404
      %p411 = scmp.eq.s32.totalorder %s24, 7
      %p412 = por %p410, %p411
      %p413 = scmp.ne.s32.totalorder %s405, %s408
      %p414 = scmp.eq.s32.totalorder %s24, 0
      %p415 = por %p413, %p414
      %p416 = scmp.ne.s32.totalorder %s405, %s408
      %p417 = scmp.eq.s32.totalorder %s29, 7
      %p418 = por %p416, %p417
      %p419 = scmp.ne.s32.totalorder %s408, %s409
      %p420 = scmp.eq.s32.totalorder %s29, 0
      %p421 = por %p419, %p420
      %p422 = scmp.ne.s32.totalorder %s408, %s409
      %p423 = scmp.eq.s32.totalorder %s30, 7
      %p424 = por %p422, %p423
      %p426 = scmp.ne.s32.totalorder %s409, %s425
      %p427 = scmp.eq.s32.totalorder %s30, 0
      %p428 = por %p426, %p427
      %s429 = ssub.s32 %s31, %s43
      %p430 = scmp.eq.s32.totalorder %s429, 0
      %s432 = sadd.s32 %s431, 1
      %s433 = scalar_select %p430, %s431, %s432
      %p436 = pneg %p430
      %p437 = scmp.eq.s32.totalorder %s24, 7
      %p438 = por %p436, %p437
      %p439 = scmp.ne.s32.totalorder %s431, %s434
      %p440 = scmp.eq.s32.totalorder %s24, 0
      %p441 = por %p439, %p440
      %p442 = scmp.ne.s32.totalorder %s431, %s434
      %p443 = scmp.eq.s32.totalorder %s29, 7
      %p444 = por %p442, %p443
      %p445 = scmp.ne.s32.totalorder %s434, %s435
      %p446 = scmp.eq.s32.totalorder %s29, 0
      %p447 = por %p445, %p446
      %p448 = scmp.ne.s32.totalorder %s434, %s435
      %p449 = scmp.eq.s32.totalorder %s30, 7
      %p450 = por %p448, %p449
      %p452 = scmp.ne.s32.totalorder %s435, %s451
      %p453 = scmp.eq.s32.totalorder %s30, 0
      %p454 = por %p452, %p453
      %p455 = scmp.le.s32.totalorder 1, %s24
      %p456 = scmp.lt.s32.totalorder %s24, 9
      %p457 = pnand %p455, %p456
      %p458 = pneg %p457
      // Predicated region
      $region9: #{tpu_custom_call.1} parent=5 // pred_check
        _
      $region10: #{tpu_custom_call.1} parent=5 // pred_check_branch
        %460 = sbr.rel (%p457) target = $region12
      $region11: #{tpu_custom_call.1} parent=5 // pred_region
        %s461 = ssub.s32 %s24, 1
        // Predicated region
        $region13: #{tpu_custom_call.1} parent=11 // pred_check
          %p462 = pneg %p369
        $region14: #{tpu_custom_call.1} parent=11 // pred_check_branch
          %464 = sbr.rel (%p462) target = $region16
        $region15: #{tpu_custom_call.1} parent=11 // pred_region
          _
        $region16: #{tpu_custom_call.1} parent=11 // pred_fallthru
          _
      $region12: #{tpu_custom_call.1} parent=5 // pred_fallthru
        _
      %p465 = scmp.lt.s32.totalorder %s24, 8
      // Predicated region
      $region17: #{tpu_custom_call.1} parent=5 // pred_check
        %p466 = pneg %p465
      $region18: #{tpu_custom_call.1} parent=5 // pred_check_branch
        %468 = sbr.rel (%p466) target = $region20
      $region19: #{tpu_custom_call.1} parent=5 // pred_region
        // Predicated region
        $region21: #{tpu_custom_call.1} parent=19 // pred_check
          %p469 = pneg %p56
        $region22: #{tpu_custom_call.1} parent=19 // pred_check_branch
          %471 = sbr.rel (%p469) target = $region24
        $region23: #{tpu_custom_call.1} parent=19 // pred_region
          %p472 = scmp.lt.s32.totalorder %s31, 1
          %s473 = scalar_select %p472, %s31, 1
          %s474 = smul.addr %s473, 4
          %s475 = scalar_lea.vmem %s0, %s474
        $region24: #{tpu_custom_call.1} parent=19 // pred_fallthru
          _
        // Predicated region
        $region25: #{tpu_custom_call.1} parent=19 // pred_check
          %p476 = pneg %p82
        $region26: #{tpu_custom_call.1} parent=19 // pred_check_branch
          %478 = sbr.rel (%p476) target = $region28
        $region27: #{tpu_custom_call.1} parent=19 // pred_region
          %p479 = scmp.lt.s32.totalorder %s31, 1
          %s480 = scalar_select %p479, %s31, 1
          %s481 = smul.addr %s480, 4
          %s482 = scalar_lea.vmem %s1, %s481
        $region28: #{tpu_custom_call.1} parent=19 // pred_fallthru
          _
        // Predicated region
        $region29: #{tpu_custom_call.1} parent=19 // pred_check
          %p483 = pneg %p108
        $region30: #{tpu_custom_call.1} parent=19 // pred_check_branch
          %485 = sbr.rel (%p483) target = $region32
        $region31: #{tpu_custom_call.1} parent=19 // pred_region
          %p486 = scmp.lt.s32.totalorder %s31, 1
          %s487 = scalar_select %p486, %s31, 1
          %s488 = smul.addr %s487, 4
          %s489 = scalar_lea.vmem %s2, %s488
        $region32: #{tpu_custom_call.1} parent=19 // pred_fallthru
          _
        // Predicated region
        $region33: #{tpu_custom_call.1} parent=19 // pred_check
          %p490 = pneg %p134
        $region34: #{tpu_custom_call.1} parent=19 // pred_check_branch
          %492 = sbr.rel (%p490) target = $region36
        $region35: #{tpu_custom_call.1} parent=19 // pred_region
          %p493 = scmp.lt.s32.totalorder %s31, 1
          %s494 = scalar_select %p493, %s31, 1
          %s495 = smul.addr %s494, 4
          %s496 = scalar_lea.vmem %s3, %s495
        $region36: #{tpu_custom_call.1} parent=19 // pred_fallthru
          _
        // Predicated region
        $region37: #{tpu_custom_call.1} parent=19 // pred_check
          %p497 = pneg %p160
        $region38: #{tpu_custom_call.1} parent=19 // pred_check_branch
          %499 = sbr.rel (%p497) target = $region40
        $region39: #{tpu_custom_call.1} parent=19 // pred_region
          %p500 = scmp.lt.s32.totalorder %s32, 3
          %s501 = scalar_select %p500, %s32, 3
          %s502 = smul.addr %s501, 16
          %s503 = smul.addr %s502, 4
          %s504 = scalar_lea.vmem %s4, %s503
        $region40: #{tpu_custom_call.1} parent=19 // pred_fallthru
          _
        // Predicated region
        $region41: #{tpu_custom_call.1} parent=19 // pred_check
          %p505 = pneg %p186
        $region42: #{tpu_custom_call.1} parent=19 // pred_check_branch
          %507 = sbr.rel (%p505) target = $region44
        $region43: #{tpu_custom_call.1} parent=19 // pred_region
          %p508 = scmp.lt.s32.totalorder %s32, 3
          %s509 = scalar_select %p508, %s32, 3
          %s510 = smul.addr %s509, 16
          %s511 = smul.addr %s510, 4
          %s512 = scalar_lea.vmem %s5, %s511
        $region44: #{tpu_custom_call.1} parent=19 // pred_fallthru
          _
        // Predicated region
        $region45: #{tpu_custom_call.1} parent=19 // pred_check
          %p513 = pneg %p212
        $region46: #{tpu_custom_call.1} parent=19 // pred_check_branch
          %515 = sbr.rel (%p513) target = $region48
        $region47: #{tpu_custom_call.1} parent=19 // pred_region
          %p516 = scmp.lt.s32.totalorder %s32, 3
          %s517 = scalar_select %p516, %s32, 3
          %s518 = smul.addr %s517, 16
          %s519 = smul.addr %s518, 4
          %s520 = scalar_lea.vmem %s6, %s519
        $region48: #{tpu_custom_call.1} parent=19 // pred_fallthru
          _
        // Predicated region
        $region49: #{tpu_custom_call.1} parent=19 // pred_check
          %p521 = pneg %p238
        $region50: #{tpu_custom_call.1} parent=19 // pred_check_branch
          %523 = sbr.rel (%p521) target = $region52
        $region51: #{tpu_custom_call.1} parent=19 // pred_region
          %p524 = scmp.lt.s32.totalorder %s32, 3
          %s525 = scalar_select %p524, %s32, 3
          %s526 = smul.addr %s525, 16
          %s527 = smul.addr %s526, 4
          %s528 = scalar_lea.vmem %s7, %s527
        $region52: #{tpu_custom_call.1} parent=19 // pred_fallthru
          _
        // Predicated region
        $region53: #{tpu_custom_call.1} parent=19 // pred_check
          %p529 = pneg %p264
        $region54: #{tpu_custom_call.1} parent=19 // pred_check_branch
          %531 = sbr.rel (%p529) target = $region56
        $region55: #{tpu_custom_call.1} parent=19 // pred_region
          %p532 = scmp.lt.s32.totalorder %s32, 3
          %s533 = scalar_select %p532, %s32, 3
          %s534 = smul.addr %s533, 4
          %s535 = smul.addr %s534, 4
          %s536 = scalar_lea.vmem %s8, %s535
        $region56: #{tpu_custom_call.1} parent=19 // pred_fallthru
          _
        // Predicated region
        $region57: #{tpu_custom_call.1} parent=19 // pred_check
          %p537 = pneg %p290
        $region58: #{tpu_custom_call.1} parent=19 // pred_check_branch
          %539 = sbr.rel (%p537) target = $region60
        $region59: #{tpu_custom_call.1} parent=19 // pred_region
          %p540 = scmp.lt.s32.totalorder %s32, 3
          %s541 = scalar_select %p540, %s32, 3
          %s542 = scalar_lea.vmem %s9, %s541
        $region60: #{tpu_custom_call.1} parent=19 // pred_fallthru
          _
        // Predicated region
        $region61: #{tpu_custom_call.1} parent=19 // pred_check
          %p543 = pneg %p316
        $region62: #{tpu_custom_call.1} parent=19 // pred_check_branch
          %545 = sbr.rel (%p543) target = $region64
        $region63: #{tpu_custom_call.1} parent=19 // pred_region
          %p546 = scmp.lt.s32.totalorder %s32, 3
          %s547 = scalar_select %p546, %s32, 3
          %s548 = scalar_lea.vmem %s10, %s547
        $region64: #{tpu_custom_call.1} parent=19 // pred_fallthru
          _
        // Predicated region
        $region65: #{tpu_custom_call.1} parent=19 // pred_check
          %p549 = pneg %p342
        $region66: #{tpu_custom_call.1} parent=19 // pred_check_branch
          %551 = sbr.rel (%p549) target = $region68
        $region67: #{tpu_custom_call.1} parent=19 // pred_region
          %p552 = scmp.lt.s32.totalorder %s32, 3
          %s553 = scalar_select %p552, %s32, 3
          %s554 = scalar_lea.vmem %s11, %s553
        $region68: #{tpu_custom_call.1} parent=19 // pred_fallthru
          _
        // Predicated region
        $region69: #{tpu_custom_call.1} parent=19 // pred_check
          %p555 = pneg %p389
        $region70: #{tpu_custom_call.1} parent=19 // pred_check_branch
          %557 = sbr.rel (%p555) target = $region72
        $region71: #{tpu_custom_call.1} parent=19 // pred_region
          %p558 = scmp.lt.s32.totalorder %s32, 3
          %s559 = scalar_select %p558, %s32, 3
          %s560 = scalar_lea.vmem %s13, %s559
        $region72: #{tpu_custom_call.1} parent=19 // pred_fallthru
          _
        // Predicated region
        $region73: #{tpu_custom_call.1} parent=19 // pred_check
          %p561 = pneg %p415
        $region74: #{tpu_custom_call.1} parent=19 // pred_check_branch
          %563 = sbr.rel (%p561) target = $region76
        $region75: #{tpu_custom_call.1} parent=19 // pred_region
          %p564 = scmp.lt.s32.totalorder %s32, 3
          %s565 = scalar_select %p564, %s32, 3
          %s566 = scalar_lea.vmem %s14, %s565
        $region76: #{tpu_custom_call.1} parent=19 // pred_fallthru
          _
      $region20: #{tpu_custom_call.1} parent=5 // pred_fallthru
        _
      %p567 = scmp.le.s32.totalorder 1, %s24
      %p568 = scmp.lt.s32.totalorder %s24, 9
      %p569 = pnand %p567, %p568
      %p570 = pneg %p569
      // Predicated region
      $region77: #{tpu_custom_call.1} parent=5 // pred_check
        _
      $region78: #{tpu_custom_call.1} parent=5 // pred_check_branch
        %572 = sbr.rel (%p569) target = $region80
      $region79: #{tpu_custom_call.1} parent=5 // pred_region
        %s573 = ssub.s32 %s24, 1
        %p574 = scmp.lt.s32.totalorder %s33, 1
        %s575 = scalar_select %p574, %s33, 1
        %s576 = smul.addr %s575, 4
        %s577 = scalar_lea.vmem %s0, %s576
        %p578 = pneg %p62
        %p579 = pneg %p59
        %p580 = scmp.lt.s32.totalorder %s33, 1
        %s581 = scalar_select %p580, %s33, 1
        %s582 = smul.addr %s581, 4
        %s583 = scalar_lea.vmem %s1, %s582
        %p584 = pneg %p88
        %p585 = pneg %p85
        %p586 = scmp.lt.s32.totalorder %s33, 1
        %s587 = scalar_select %p586, %s33, 1
        %s588 = smul.addr %s587, 4
        %s589 = scalar_lea.vmem %s2, %s588
        %p590 = pneg %p114
        %p591 = pneg %p111
        %p592 = scmp.lt.s32.totalorder %s33, 1
        %s593 = scalar_select %p592, %s33, 1
        %s594 = smul.addr %s593, 4
        %s595 = scalar_lea.vmem %s3, %s594
        %p596 = pneg %p140
        %p597 = pneg %p137
        %p598 = scmp.lt.s32.totalorder %s34, 3
        %s599 = scalar_select %p598, %s34, 3
        %s600 = smul.addr %s599, 16
        %s601 = smul.addr %s600, 4
        %s602 = scalar_lea.vmem %s4, %s601
        %p603 = pneg %p166
        %p604 = pneg %p163
        %p605 = scmp.lt.s32.totalorder %s34, 3
        %s606 = scalar_select %p605, %s34, 3
        %s607 = smul.addr %s606, 16
        %s608 = smul.addr %s607, 4
        %s609 = scalar_lea.vmem %s5, %s608
        %p610 = pneg %p192
        %p611 = pneg %p189
        %p612 = scmp.lt.s32.totalorder %s34, 3
        %s613 = scalar_select %p612, %s34, 3
        %s614 = smul.addr %s613, 16
        %s615 = smul.addr %s614, 4
        %s616 = scalar_lea.vmem %s6, %s615
        %p617 = pneg %p218
        %p618 = pneg %p215
        %p619 = scmp.lt.s32.totalorder %s34, 3
        %s620 = scalar_select %p619, %s34, 3
        %s621 = smul.addr %s620, 16
        %s622 = smul.addr %s621, 4
        %s623 = scalar_lea.vmem %s7, %s622
        %p624 = pneg %p244
        %p625 = pneg %p241
        %p626 = scmp.lt.s32.totalorder %s34, 3
        %s627 = scalar_select %p626, %s34, 3
        %s628 = smul.addr %s627, 4
        %s629 = smul.addr %s628, 4
        %s630 = scalar_lea.vmem %s8, %s629
        %p631 = pneg %p270
        %p632 = pneg %p267
        %p633 = scmp.lt.s32.totalorder %s34, 3
        %s634 = scalar_select %p633, %s34, 3
        %s635 = scalar_lea.vmem %s9, %s634
        %p636 = pneg %p296
        %p637 = pneg %p293
        %p638 = scmp.lt.s32.totalorder %s34, 3
        %s639 = scalar_select %p638, %s34, 3
        %s640 = scalar_lea.vmem %s10, %s639
        %p641 = pneg %p322
        %p642 = pneg %p319
        %p643 = scmp.lt.s32.totalorder %s34, 3
        %s644 = scalar_select %p643, %s34, 3
        %s645 = scalar_lea.vmem %s11, %s644
        %p646 = pneg %p348
        %p647 = pneg %p345
        %p648 = pneg %p369
        %p649 = pneg %p366
        %p650 = scmp.lt.s32.totalorder %s34, 3
        %s651 = scalar_select %p650, %s34, 3
        %s652 = scalar_lea.vmem %s13, %s651
        %p653 = pneg %p395
        %p654 = pneg %p392
        %p655 = scmp.lt.s32.totalorder %s34, 3
        %s656 = scalar_select %p655, %s34, 3
        %s657 = scalar_lea.vmem %s14, %s656
        %p658 = pneg %p421
        %p659 = pneg %p418
        %p660 = pneg %p447
        %p661 = pneg %p444
        %s662 = sand.u32 %s434, 1
        %s663 = scalar_lea.sflag [#allocation3], %s662
        %s664 = sand.u32 %s434, 1
        %s665 = smul.addr %s664, 8
        %s666 = scalar_lea.vmem [#allocation2], %s665
        %p667 = scmp.lt.s32.totalorder %s33, 1
        %s668 = scalar_select %p667, %s33, 1
        %s669 = smul.addr %s668, 4
        %s670 = scalar_lea.vmem %s0, %s669
        %p671 = scmp.lt.s32.totalorder %s33, 1
        %s672 = scalar_select %p671, %s33, 1
        %s673 = smul.addr %s672, 4
        %s674 = scalar_lea.vmem %s1, %s673
        %p675 = scmp.lt.s32.totalorder %s33, 1
        %s676 = scalar_select %p675, %s33, 1
        %s677 = smul.addr %s676, 4
        %s678 = scalar_lea.vmem %s2, %s677
        %p679 = scmp.lt.s32.totalorder %s33, 1
        %s680 = scalar_select %p679, %s33, 1
        %s681 = smul.addr %s680, 4
        %s682 = scalar_lea.vmem %s3, %s681
        %p683 = scmp.lt.s32.totalorder %s34, 3
        %s684 = scalar_select %p683, %s34, 3
        %s685 = smul.addr %s684, 16
        %s686 = smul.addr %s685, 4
        %s687 = scalar_lea.vmem %s4, %s686
        %p688 = scmp.lt.s32.totalorder %s34, 3
        %s689 = scalar_select %p688, %s34, 3
        %s690 = smul.addr %s689, 16
        %s691 = smul.addr %s690, 4
        %s692 = scalar_lea.vmem %s5, %s691
        %p693 = scmp.lt.s32.totalorder %s34, 3
        %s694 = scalar_select %p693, %s34, 3
        %s695 = smul.addr %s694, 16
        %s696 = smul.addr %s695, 4
        %s697 = scalar_lea.vmem %s6, %s696
        %p698 = scmp.lt.s32.totalorder %s34, 3
        %s699 = scalar_select %p698, %s34, 3
        %s700 = smul.addr %s699, 16
        %s701 = smul.addr %s700, 4
        %s702 = scalar_lea.vmem %s7, %s701
        %p703 = scmp.lt.s32.totalorder %s34, 3
        %s704 = scalar_select %p703, %s34, 3
        %s705 = smul.addr %s704, 4
        %s706 = smul.addr %s705, 4
        %s707 = scalar_lea.vmem %s8, %s706
        %p708 = scmp.lt.s32.totalorder %s34, 3
        %s709 = scalar_select %p708, %s34, 3
        %s710 = scalar_lea.vmem %s9, %s709
        %p711 = scmp.lt.s32.totalorder %s34, 3
        %s712 = scalar_select %p711, %s34, 3
        %s713 = scalar_lea.vmem %s10, %s712
        %p714 = scmp.lt.s32.totalorder %s34, 3
        %s715 = scalar_select %p714, %s34, 3
        %s716 = scalar_lea.vmem %s11, %s715
        %p717 = scmp.lt.s32.totalorder %s34, 3
        %s718 = scalar_select %p717, %s34, 3
        %s719 = scalar_lea.vmem %s13, %s718
        %p720 = scmp.lt.s32.totalorder %s34, 3
        %s721 = scalar_select %p720, %s34, 3
        %s722 = scalar_lea.vmem %s14, %s721
        %v724 = vld [vmem:[%s670] sm:$0xf]
        %v725 = vld [vmem:[%s674] sm:$0xf]
        %v726 = vld [vmem:[%s678] sm:$0xf]
        %v727 = vld [vmem:[%s682] sm:$0xf]
        %v728 = vld [vmem:[%s687] sm:$0xf]
        %v729 = vld [vmem:[%s687 + $0x4] sm:$0xf]
        %v730 = vld [vmem:[%s687 + $0x8] sm:$0xf]
        %v731 = vld [vmem:[%s687 + $0xc] sm:$0xf]
        %v732 = vld [vmem:[%s687 + $0x10] sm:$0xf]
        %v733 = vld [vmem:[%s687 + $0x14] sm:$0xf]
        %v734 = vld [vmem:[%s687 + $0x18] sm:$0xf]
        %v735 = vld [vmem:[%s687 + $0x1c] sm:$0xf]
        %v736 = vld [vmem:[%s687 + $0x20] sm:$0xf]
        %v737 = vld [vmem:[%s687 + $0x24] sm:$0xf]
        %v738 = vld [vmem:[%s687 + $0x28] sm:$0xf]
        %v739 = vld [vmem:[%s687 + $0x2c] sm:$0xf]
        %v740 = vld [vmem:[%s687 + $0x30] sm:$0xf]
        %v741 = vld [vmem:[%s687 + $0x34] sm:$0xf]
        %v742 = vld [vmem:[%s687 + $0x38] sm:$0xf]
        %v743 = vld [vmem:[%s687 + $0x3c] sm:$0xf]
        %v744 = vld [vmem:[%s710] sm:$0x1]
        %v746 = vlaneseq
        %v747 = vshrl.u32 %v746, 7
        %v748 = vsub.s32 0, %v747
        %v749 = vrot.slane %v744, %v748
        %v767 = vunpack.c.l.b16 %v728
        %v768 = vunpack.c.l.b16 %v729
        %v769 = vunpack.c.l.b16 %v730
        %v770 = vunpack.c.l.b16 %v731
        %v771 = vunpack.c.l.b16 %v732
        %v772 = vunpack.c.l.b16 %v733
        %v773 = vunpack.c.l.b16 %v734
        %v774 = vunpack.c.l.b16 %v735
        %v775 = vunpack.c.l.b16 %v736
        %v776 = vunpack.c.l.b16 %v737
        %v777 = vunpack.c.l.b16 %v738
        %v778 = vunpack.c.l.b16 %v739
        %v779 = vunpack.c.l.b16 %v740
        %v780 = vunpack.c.l.b16 %v741
        %v781 = vunpack.c.l.b16 %v742
        %v782 = vunpack.c.l.b16 %v743
        %v783 = vpack.c.b16 %v768, %v767
        %v784 = vpack.c.b16 %v770, %v769
        %v785 = vpack.c.b16 %v772, %v771
        %v786 = vpack.c.b16 %v774, %v773
        %v787 = vpack.c.b16 %v776, %v775
        %v788 = vpack.c.b16 %v778, %v777
        %v789 = vpack.c.b16 %v780, %v779
        %v790 = vpack.c.b16 %v782, %v781
        %799 = vmatprep.subr.bf16.mxu0 0
        %800 = vmatpush1.bf16.msra.mxu0 %v783
        %801 = vmatprep.subr.bf16.mxu0 0
        %802 = vmatpush1.bf16.msra.mxu0 %v784
        %803 = vmatprep.subr.bf16.mxu0 0
        %804 = vmatpush1.bf16.msra.mxu0 %v785
        %805 = vmatprep.subr.bf16.mxu0 0
        %806 = vmatpush1.bf16.msra.mxu0 %v786
        %807 = vmatprep.subr.bf16.mxu0 0
        %808 = vmatpush1.bf16.msra.mxu0 %v787
        %809 = vmatprep.subr.bf16.mxu0 0
        %810 = vmatpush1.bf16.msra.mxu0 %v788
        %811 = vmatprep.subr.bf16.mxu0 0
        %812 = vmatpush1.bf16.msra.mxu0 %v789
        %813 = vmatprep.subr.bf16.mxu0 0
        %814 = vmatpush1.bf16.msra.mxu0 %v790
        %815 = vmatprep.subr.bf16.mxu0 0
        %816 = vmatpush1.bf16.msra.mxu0 0
        %817 = vmatprep.subr.bf16.mxu0 0
        %818 = vmatpush1.bf16.msra.mxu0 0
        %819 = vmatprep.subr.bf16.mxu0 0
        %820 = vmatpush1.bf16.msra.mxu0 0
        %821 = vmatprep.subr.bf16.mxu0 0
        %822 = vmatpush1.bf16.msra.mxu0 0
        %823 = vmatprep.subr.bf16.mxu0 0
        %824 = vmatpush1.bf16.msra.mxu0 0
        %825 = vmatprep.subr.bf16.mxu0 0
        %826 = vmatpush1.bf16.msra.mxu0 0
        %827 = vmatprep.subr.bf16.mxu0 0
        %828 = vmatpush1.bf16.msra.mxu0 0
        %829 = vmatprep.subr.bf16.mxu0 0
        %830 = vmatpush1.bf16.msra.mxu0 0
        %831 = vmatprep.mubr.bf16.mxu0 0
        %832 = vmatmul.mubr.bf16.gmra.mrb[0].mxu0 %v724
        %v833 = vpop.f32.mrb[0].mxu0
        %v834 = vadd.f32 %v749, %v833
        %v835 = vpop.f32.mrb[0].mxu0
        %v836 = vpop.f32.mrb[0].mxu0
        %v837 = vpop.f32.mrb[0].mxu0
        %838 = vdwg.mxu0
        %v839 = vld [vmem:[%s692] sm:$0xf]
        %v840 = vld [vmem:[%s692 + $0x4] sm:$0xf]
        %v841 = vld [vmem:[%s692 + $0x8] sm:$0xf]
        %v842 = vld [vmem:[%s692 + $0xc] sm:$0xf]
        %v843 = vld [vmem:[%s692 + $0x10] sm:$0xf]
        %v844 = vld [vmem:[%s692 + $0x14] sm:$0xf]
        %v845 = vld [vmem:[%s692 + $0x18] sm:$0xf]
        %v846 = vld [vmem:[%s692 + $0x1c] sm:$0xf]
        %v847 = vld [vmem:[%s692 + $0x20] sm:$0xf]
        %v848 = vld [vmem:[%s692 + $0x24] sm:$0xf]
        %v849 = vld [vmem:[%s692 + $0x28] sm:$0xf]
        %v850 = vld [vmem:[%s692 + $0x2c] sm:$0xf]
        %v851 = vld [vmem:[%s692 + $0x30] sm:$0xf]
        %v852 = vld [vmem:[%s692 + $0x34] sm:$0xf]
        %v853 = vld [vmem:[%s692 + $0x38] sm:$0xf]
        %v854 = vld [vmem:[%s692 + $0x3c] sm:$0xf]
        %v855 = vld [vmem:[%s713] sm:$0x1]
        %v857 = vlaneseq
        %v858 = vshrl.u32 %v857, 7
        %v859 = vsub.s32 0, %v858
        %v860 = vrot.slane %v855, %v859
        %v878 = vunpack.c.l.b16 %v839
        %v879 = vunpack.c.l.b16 %v840
        %v880 = vunpack.c.l.b16 %v841
        %v881 = vunpack.c.l.b16 %v842
        %v882 = vunpack.c.l.b16 %v843
        %v883 = vunpack.c.l.b16 %v844
        %v884 = vunpack.c.l.b16 %v845
        %v885 = vunpack.c.l.b16 %v846
        %v886 = vunpack.c.l.b16 %v847
        %v887 = vunpack.c.l.b16 %v848
        %v888 = vunpack.c.l.b16 %v849
        %v889 = vunpack.c.l.b16 %v850
        %v890 = vunpack.c.l.b16 %v851
        %v891 = vunpack.c.l.b16 %v852
        %v892 = vunpack.c.l.b16 %v853
        %v893 = vunpack.c.l.b16 %v854
        %v894 = vpack.c.b16 %v879, %v878
        %v895 = vpack.c.b16 %v881, %v880
        %v896 = vpack.c.b16 %v883, %v882
        %v897 = vpack.c.b16 %v885, %v884
        %v898 = vpack.c.b16 %v887, %v886
        %v899 = vpack.c.b16 %v889, %v888
        %v900 = vpack.c.b16 %v891, %v890
        %v901 = vpack.c.b16 %v893, %v892
        %910 = vmatprep.subr.bf16.mxu0 0
        %911 = vmatpush1.bf16.msra.mxu0 %v894
        %912 = vmatprep.subr.bf16.mxu0 0
        %913 = vmatpush1.bf16.msra.mxu0 %v895
        %914 = vmatprep.subr.bf16.mxu0 0
        %915 = vmatpush1.bf16.msra.mxu0 %v896
        %916 = vmatprep.subr.bf16.mxu0 0
        %917 = vmatpush1.bf16.msra.mxu0 %v897
        %918 = vmatprep.subr.bf16.mxu0 0
        %919 = vmatpush1.bf16.msra.mxu0 %v898
        %920 = vmatprep.subr.bf16.mxu0 0
        %921 = vmatpush1.bf16.msra.mxu0 %v899
        %922 = vmatprep.subr.bf16.mxu0 0
        %923 = vmatpush1.bf16.msra.mxu0 %v900
        %924 = vmatprep.subr.bf16.mxu0 0
        %925 = vmatpush1.bf16.msra.mxu0 %v901
        %926 = vmatprep.subr.bf16.mxu0 0
        %927 = vmatpush1.bf16.msra.mxu0 0
        %928 = vmatprep.subr.bf16.mxu0 0
        %929 = vmatpush1.bf16.msra.mxu0 0
        %930 = vmatprep.subr.bf16.mxu0 0
        %931 = vmatpush1.bf16.msra.mxu0 0
        %932 = vmatprep.subr.bf16.mxu0 0
        %933 = vmatpush1.bf16.msra.mxu0 0
        %934 = vmatprep.subr.bf16.mxu0 0
        %935 = vmatpush1.bf16.msra.mxu0 0
        %936 = vmatprep.subr.bf16.mxu0 0
        %937 = vmatpush1.bf16.msra.mxu0 0
        %938 = vmatprep.subr.bf16.mxu0 0
        %939 = vmatpush1.bf16.msra.mxu0 0
        %940 = vmatprep.subr.bf16.mxu0 0
        %941 = vmatpush1.bf16.msra.mxu0 0
        %942 = vmatprep.mubr.bf16.mxu0 0
        %943 = vmatmul.mubr.bf16.gmra.mrb[0].mxu0 %v725
        %v944 = vpop.f32.mrb[0].mxu0
        %v945 = vadd.f32 %v860, %v944
        %v946 = vpop.f32.mrb[0].mxu0
        %v947 = vpop.f32.mrb[0].mxu0
        %v948 = vpop.f32.mrb[0].mxu0
        %949 = vdwg.mxu0
        %v950 = vld [vmem:[%s697] sm:$0xf]
        %v951 = vld [vmem:[%s697 + $0x4] sm:$0xf]
        %v952 = vld [vmem:[%s697 + $0x8] sm:$0xf]
        %v953 = vld [vmem:[%s697 + $0xc] sm:$0xf]
        %v954 = vld [vmem:[%s697 + $0x10] sm:$0xf]
        %v955 = vld [vmem:[%s697 + $0x14] sm:$0xf]
        %v956 = vld [vmem:[%s697 + $0x18] sm:$0xf]
        %v957 = vld [vmem:[%s697 + $0x1c] sm:$0xf]
        %v958 = vld [vmem:[%s697 + $0x20] sm:$0xf]
        %v959 = vld [vmem:[%s697 + $0x24] sm:$0xf]
        %v960 = vld [vmem:[%s697 + $0x28] sm:$0xf]
        %v961 = vld [vmem:[%s697 + $0x2c] sm:$0xf]
        %v962 = vld [vmem:[%s697 + $0x30] sm:$0xf]
        %v963 = vld [vmem:[%s697 + $0x34] sm:$0xf]
        %v964 = vld [vmem:[%s697 + $0x38] sm:$0xf]
        %v965 = vld [vmem:[%s697 + $0x3c] sm:$0xf]
        %v966 = vld [vmem:[%s716] sm:$0x1]
        %v968 = vlaneseq
        %v969 = vshrl.u32 %v968, 7
        %v970 = vsub.s32 0, %v969
        %v971 = vrot.slane %v966, %v970
        %v989 = vunpack.c.l.b16 %v950
        %v990 = vunpack.c.l.b16 %v951
        %v991 = vunpack.c.l.b16 %v952
        %v992 = vunpack.c.l.b16 %v953
        %v993 = vunpack.c.l.b16 %v954
        %v994 = vunpack.c.l.b16 %v955
        %v995 = vunpack.c.l.b16 %v956
        %v996 = vunpack.c.l.b16 %v957
        %v997 = vunpack.c.l.b16 %v958
        %v998 = vunpack.c.l.b16 %v959
        %v999 = vunpack.c.l.b16 %v960
        %v1000 = vunpack.c.l.b16 %v961
        %v1001 = vunpack.c.l.b16 %v962
        %v1002 = vunpack.c.l.b16 %v963
        %v1003 = vunpack.c.l.b16 %v964
        %v1004 = vunpack.c.l.b16 %v965
        %v1005 = vpack.c.b16 %v990, %v989
        %v1006 = vpack.c.b16 %v992, %v991
        %v1007 = vpack.c.b16 %v994, %v993
        %v1008 = vpack.c.b16 %v996, %v995
        %v1009 = vpack.c.b16 %v998, %v997
        %v1010 = vpack.c.b16 %v1000, %v999
        %v1011 = vpack.c.b16 %v1002, %v1001
        %v1012 = vpack.c.b16 %v1004, %v1003
        %1021 = vmatprep.subr.bf16.mxu0 0
        %1022 = vmatpush1.bf16.msra.mxu0 %v1005
        %1023 = vmatprep.subr.bf16.mxu0 0
        %1024 = vmatpush1.bf16.msra.mxu0 %v1006
        %1025 = vmatprep.subr.bf16.mxu0 0
        %1026 = vmatpush1.bf16.msra.mxu0 %v1007
        %1027 = vmatprep.subr.bf16.mxu0 0
        %1028 = vmatpush1.bf16.msra.mxu0 %v1008
        %1029 = vmatprep.subr.bf16.mxu0 0
        %1030 = vmatpush1.bf16.msra.mxu0 %v1009
        %1031 = vmatprep.subr.bf16.mxu0 0
        %1032 = vmatpush1.bf16.msra.mxu0 %v1010
        %1033 = vmatprep.subr.bf16.mxu0 0
        %1034 = vmatpush1.bf16.msra.mxu0 %v1011
        %1035 = vmatprep.subr.bf16.mxu0 0
        %1036 = vmatpush1.bf16.msra.mxu0 %v1012
        %1037 = vmatprep.subr.bf16.mxu0 0
        %1038 = vmatpush1.bf16.msra.mxu0 0
        %1039 = vmatprep.subr.bf16.mxu0 0
        %1040 = vmatpush1.bf16.msra.mxu0 0
        %1041 = vmatprep.subr.bf16.mxu0 0
        %1042 = vmatpush1.bf16.msra.mxu0 0
        %1043 = vmatprep.subr.bf16.mxu0 0
        %1044 = vmatpush1.bf16.msra.mxu0 0
        %1045 = vmatprep.subr.bf16.mxu0 0
        %1046 = vmatpush1.bf16.msra.mxu0 0
        %1047 = vmatprep.subr.bf16.mxu0 0
        %1048 = vmatpush1.bf16.msra.mxu0 0
        %1049 = vmatprep.subr.bf16.mxu0 0
        %1050 = vmatpush1.bf16.msra.mxu0 0
        %1051 = vmatprep.subr.bf16.mxu0 0
        %1052 = vmatpush1.bf16.msra.mxu0 0
        %1053 = vmatprep.mubr.bf16.mxu0 0
        %1054 = vmatmul.mubr.bf16.gmra.mrb[0].mxu0 %v726
        %v1055 = vpop.f32.mrb[0].mxu0
        %v1056 = vadd.f32 %v971, %v1055
        %v1057 = vpop.f32.mrb[0].mxu0
        %v1058 = vpop.f32.mrb[0].mxu0
        %v1059 = vpop.f32.mrb[0].mxu0
        %1060 = vdwg.mxu0
        %v1061 = vld [vmem:[%s702] sm:$0xf]
        %v1062 = vld [vmem:[%s702 + $0x4] sm:$0xf]
        %v1063 = vld [vmem:[%s702 + $0x8] sm:$0xf]
        %v1064 = vld [vmem:[%s702 + $0xc] sm:$0xf]
        %v1065 = vld [vmem:[%s702 + $0x10] sm:$0xf]
        %v1066 = vld [vmem:[%s702 + $0x14] sm:$0xf]
        %v1067 = vld [vmem:[%s702 + $0x18] sm:$0xf]
        %v1068 = vld [vmem:[%s702 + $0x1c] sm:$0xf]
        %v1069 = vld [vmem:[%s702 + $0x20] sm:$0xf]
        %v1070 = vld [vmem:[%s702 + $0x24] sm:$0xf]
        %v1071 = vld [vmem:[%s702 + $0x28] sm:$0xf]
        %v1072 = vld [vmem:[%s702 + $0x2c] sm:$0xf]
        %v1073 = vld [vmem:[%s702 + $0x30] sm:$0xf]
        %v1074 = vld [vmem:[%s702 + $0x34] sm:$0xf]
        %v1075 = vld [vmem:[%s702 + $0x38] sm:$0xf]
        %v1076 = vld [vmem:[%s702 + $0x3c] sm:$0xf]
        %v1093 = vunpack.c.l.b16 %v1061
        %v1094 = vunpack.c.l.b16 %v1062
        %v1095 = vunpack.c.l.b16 %v1063
        %v1096 = vunpack.c.l.b16 %v1064
        %v1097 = vunpack.c.l.b16 %v1065
        %v1098 = vunpack.c.l.b16 %v1066
        %v1099 = vunpack.c.l.b16 %v1067
        %v1100 = vunpack.c.l.b16 %v1068
        %v1101 = vunpack.c.l.b16 %v1069
        %v1102 = vunpack.c.l.b16 %v1070
        %v1103 = vunpack.c.l.b16 %v1071
        %v1104 = vunpack.c.l.b16 %v1072
        %v1105 = vunpack.c.l.b16 %v1073
        %v1106 = vunpack.c.l.b16 %v1074
        %v1107 = vunpack.c.l.b16 %v1075
        %v1108 = vunpack.c.l.b16 %v1076
        %v1109 = vpack.c.b16 %v1094, %v1093
        %v1110 = vpack.c.b16 %v1096, %v1095
        %v1111 = vpack.c.b16 %v1098, %v1097
        %v1112 = vpack.c.b16 %v1100, %v1099
        %v1113 = vpack.c.b16 %v1102, %v1101
        %v1114 = vpack.c.b16 %v1104, %v1103
        %v1115 = vpack.c.b16 %v1106, %v1105
        %v1116 = vpack.c.b16 %v1108, %v1107
        %1125 = vmatprep.subr.bf16.mxu0 0
        %1126 = vmatpush1.bf16.msra.mxu0 %v1109
        %1127 = vmatprep.subr.bf16.mxu0 0
        %1128 = vmatpush1.bf16.msra.mxu0 %v1110
        %1129 = vmatprep.subr.bf16.mxu0 0
        %1130 = vmatpush1.bf16.msra.mxu0 %v1111
        %1131 = vmatprep.subr.bf16.mxu0 0
        %1132 = vmatpush1.bf16.msra.mxu0 %v1112
        %1133 = vmatprep.subr.bf16.mxu0 0
        %1134 = vmatpush1.bf16.msra.mxu0 %v1113
        %1135 = vmatprep.subr.bf16.mxu0 0
        %1136 = vmatpush1.bf16.msra.mxu0 %v1114
        %1137 = vmatprep.subr.bf16.mxu0 0
        %1138 = vmatpush1.bf16.msra.mxu0 %v1115
        %1139 = vmatprep.subr.bf16.mxu0 0
        %1140 = vmatpush1.bf16.msra.mxu0 %v1116
        %1141 = vmatprep.subr.bf16.mxu0 0
        %1142 = vmatpush1.bf16.msra.mxu0 0
        %1143 = vmatprep.subr.bf16.mxu0 0
        %1144 = vmatpush1.bf16.msra.mxu0 0
        %1145 = vmatprep.subr.bf16.mxu0 0
        %1146 = vmatpush1.bf16.msra.mxu0 0
        %1147 = vmatprep.subr.bf16.mxu0 0
        %1148 = vmatpush1.bf16.msra.mxu0 0
        %1149 = vmatprep.subr.bf16.mxu0 0
        %1150 = vmatpush1.bf16.msra.mxu0 0
        %1151 = vmatprep.subr.bf16.mxu0 0
        %1152 = vmatpush1.bf16.msra.mxu0 0
        %1153 = vmatprep.subr.bf16.mxu0 0
        %1154 = vmatpush1.bf16.msra.mxu0 0
        %1155 = vmatprep.subr.bf16.mxu0 0
        %1156 = vmatpush1.bf16.msra.mxu0 0
        %1157 = vmatprep.mubr.bf16.mxu0 0
        %1158 = vmatmul.mubr.bf16.gmra.mrb[0].mxu0 %v727
        %v1159 = vpop.f32.mrb[0].mxu0
        %v1160 = vadd.f32 0.0, %v1159
        %v1161 = vpop.f32.mrb[0].mxu0
        %v1162 = vpop.f32.mrb[0].mxu0
        %v1163 = vpop.f32.mrb[0].mxu0
        %1164 = vdwg.mxu0
        %v1165 = vld [vmem:[%s719] sm:$0x1]
        %v1167 = vlaneseq
        %v1168 = vshrl.u32 %v1167, 7
        %v1169 = vsub.s32 0, %v1168
        %v1170 = vrot.slane %v1165, %v1169
        %v1172 = vadd.f32 %v834, %v1170
        %v1173 = vmul.f32 %v1172, 0.088388346
        %v1174 = vpack.c.bf16 %v1173, %v1173
        %v1175 = vld [vmem:[%s722] sm:$0x1]
        %v1177 = vlaneseq
        %v1178 = vshrl.u32 %v1177, 7
        %v1179 = vsub.s32 0, %v1178
        %v1180 = vrot.slane %v1175, %v1179
        %v1182 = vadd.f32 %v834, %v1180
        %v1183 = vmul.f32 %v1182, 0.088388346
        %v1184 = vpack.c.bf16 %v1183, %v1183
        %v1185 = vpack.c.bf16 %v945, %v945
        %v1186 = vpack.c.bf16 %v1160, %v1160
        %vm1187 = vcmask 261120
        %v1189 = vsel %vm1187, %v1184, 0
        %v1192 = vsel %vm1187, %v1186, 0
        %1194 = vmatprep.subr.bf16.mxu0 0
        %1195 = vmatpush1.bf16.xpose.msra.mxu0 %v1192
        %1196 = vmatprep.subr.bf16.mxu0 0
        %1197 = vmatpush1.bf16.xpose.msra.mxu0 0
        %1198 = vmatprep.subr.bf16.mxu0 0
        %1199 = vmatpush1.bf16.xpose.msra.mxu0 0
        %1200 = vmatprep.subr.bf16.mxu0 0
        %1201 = vmatpush1.bf16.xpose.msra.mxu0 0
        %1202 = vmatprep.subr.bf16.mxu0 0
        %1203 = vmatpush1.bf16.xpose.msra.mxu0 0
        %1204 = vmatprep.subr.bf16.mxu0 0
        %1205 = vmatpush1.bf16.xpose.msra.mxu0 0
        %1206 = vmatprep.subr.bf16.mxu0 0
        %1207 = vmatpush1.bf16.xpose.msra.mxu0 0
        %1208 = vmatprep.subr.bf16.mxu0 0
        %1209 = vmatpush1.bf16.xpose.msra.mxu0 0
        %1210 = vmatprep.subr.bf16.mxu0 0
        %1211 = vmatpush1.bf16.xpose.msra.mxu0 0
        %1212 = vmatprep.subr.bf16.mxu0 0
        %1213 = vmatpush1.bf16.xpose.msra.mxu0 0
        %1214 = vmatprep.subr.bf16.mxu0 0
        %1215 = vmatpush1.bf16.xpose.msra.mxu0 0
        %1216 = vmatprep.subr.bf16.mxu0 0
        %1217 = vmatpush1.bf16.xpose.msra.mxu0 0
        %1218 = vmatprep.subr.bf16.mxu0 0
        %1219 = vmatpush1.bf16.xpose.msra.mxu0 0
        %1220 = vmatprep.subr.bf16.mxu0 0
        %1221 = vmatpush1.bf16.xpose.msra.mxu0 0
        %1222 = vmatprep.subr.bf16.mxu0 0
        %1223 = vmatpush1.bf16.xpose.msra.mxu0 0
        %1224 = vmatprep.subr.bf16.mxu0 0
        %1225 = vmatpush1.bf16.xpose.msra.mxu0 0
        %1226 = vmatprep.mubr.bf16.mxu0 0
        %1227 = vmatmul.mubr.bf16.gmra.mrb[0].mxu0 %v1189
        %v1228 = vpop.f32.mrb[0].mxu0
        %v1229 = vadd.f32 0.0, %v1228
        %v1230 = vpop.f32.mrb[0].mxu0
        %v1231 = vpop.f32.mrb[0].mxu0
        %v1232 = vpop.f32.mrb[0].mxu0
        %1233 = vdwg.mxu0
        %v1234 = vlaneseq
        %v1235 = vshrl.u32 %v1234, 7
        %v1236 = vlaneseq
        %v1237 = vand.u32 %v1236, 127
        %1239 = vrot.lane.b32.xlu0 %v1229, 121
        %v1240 = vpop.permute.xlu0 %1239
        %1242 = vrot.lane.b32.xlu0 %v1229, 1
        %v1243 = vpop.permute.xlu0 %1242
        %vm1245 = vcmask 7168
        %v1246 = vsel %vm1245, %v1240, %v1243
        %v1247 = vand.u32 %v1235, 1
        %vm1248 = vcmp.ne.s32.totalorder %v1247, 0
        %1250 = vrot.lane.b32.xlu0 %v1246, 121
        %v1251 = vpop.permute.xlu0 %1250
        %1253 = vrot.lane.b32.xlu0 %v1246, 1
        %v1254 = vpop.permute.xlu0 %1253
        %v1256 = vsel %vm1245, %v1251, %v1254
        %v1257 = vsel %vm1248, %v1256, %v1246
        %v1258 = vand.u32 %v1235, 2
        %vm1259 = vcmp.ne.s32.totalorder %v1258, 0
        %1261 = vrot.lane.b32.xlu0 %v1257, 122
        %v1262 = vpop.permute.xlu0 %1261
        %1264 = vrot.lane.b32.xlu0 %v1257, 2
        %v1265 = vpop.permute.xlu0 %1264
        %vm1267 = vcmask 15360
        %v1268 = vsel %vm1267, %v1262, %v1265
        %v1269 = vsel %vm1259, %v1268, %v1257
        %v1270 = vand.u32 %v1235, 4
        %vm1271 = vcmp.ne.s32.totalorder %v1270, 0
        %1273 = vrot.lane.b32.xlu0 %v1269, 124
        %v1274 = vpop.permute.xlu0 %1273
        %1276 = vrot.lane.b32.xlu0 %v1269, 4
        %v1277 = vpop.permute.xlu0 %1276
        %vm1279 = vcmask 31744
        %v1280 = vsel %vm1279, %v1274, %v1277
        %v1281 = vsel %vm1271, %v1280, %v1269
        %v1282 = vrot.slane %v1229, 1
        %vm1284 = vcmask 1046528
        %v1285 = vsel %vm1284, %v1282, %v1282
        %1287 = vrot.lane.b32.xlu0 %v1285, 122
        %v1288 = vpop.permute.xlu0 %1287
        %1290 = vrot.lane.b32.xlu0 %v1285, 2
        %v1291 = vpop.permute.xlu0 %1290
        %v1293 = vsel %vm1267, %v1288, %v1291
        %1295 = vrot.lane.b32.xlu0 %v1293, 121
        %v1296 = vpop.permute.xlu0 %1295
        %1298 = vrot.lane.b32.xlu0 %v1293, 1
        %v1299 = vpop.permute.xlu0 %1298
        %v1301 = vsel %vm1245, %v1296, %v1299
        %v1302 = vsel %vm1248, %v1301, %v1293
        %1304 = vrot.lane.b32.xlu0 %v1302, 122
        %v1305 = vpop.permute.xlu0 %1304
        %1307 = vrot.lane.b32.xlu0 %v1302, 2
        %v1308 = vpop.permute.xlu0 %1307
        %v1310 = vsel %vm1267, %v1305, %v1308
        %v1311 = vsel %vm1259, %v1310, %v1302
        %1313 = vrot.lane.b32.xlu0 %v1311, 124
        %v1314 = vpop.permute.xlu0 %1313
        %1316 = vrot.lane.b32.xlu0 %v1311, 4
        %v1317 = vpop.permute.xlu0 %1316
        %v1319 = vsel %vm1279, %v1314, %v1317
        %v1320 = vsel %vm1271, %v1319, %v1311
        %vm1321 = vcmp.le.s32.totalorder %v1237, %v1235
        %v1322 = vadd.s32 %v1235, 1
        %vm1323 = vcmp.eq.s32.totalorder %v1237, %v1322
        %v1324 = vsel %vm1323, 0.0, %v1320
        %v1325 = vsel %vm1321, %v1281, %v1324
        %v1327 = vsel %vm1187, %v1174, 0
        %v1330 = vsel %vm1187, %v1185, 0
        %1332 = vmatprep.subr.bf16.mxu0 0
        %1333 = vmatpush1.bf16.xpose.msra.mxu0 %v1330
        %1334 = vmatprep.subr.bf16.mxu0 0
        %1335 = vmatpush1.bf16.xpose.msra.mxu0 0
        %1336 = vmatprep.subr.bf16.mxu0 0
        %1337 = vmatpush1.bf16.xpose.msra.mxu0 0
        %1338 = vmatprep.subr.bf16.mxu0 0
        %1339 = vmatpush1.bf16.xpose.msra.mxu0 0
        %1340 = vmatprep.subr.bf16.mxu0 0
        %1341 = vmatpush1.bf16.xpose.msra.mxu0 0
        %1342 = vmatprep.subr.bf16.mxu0 0
        %1343 = vmatpush1.bf16.xpose.msra.mxu0 0
        %1344 = vmatprep.subr.bf16.mxu0 0
        %1345 = vmatpush1.bf16.xpose.msra.mxu0 0
        %1346 = vmatprep.subr.bf16.mxu0 0
        %1347 = vmatpush1.bf16.xpose.msra.mxu0 0
        %1348 = vmatprep.subr.bf16.mxu0 0
        %1349 = vmatpush1.bf16.xpose.msra.mxu0 0
        %1350 = vmatprep.subr.bf16.mxu0 0
        %1351 = vmatpush1.bf16.xpose.msra.mxu0 0
        %1352 = vmatprep.subr.bf16.mxu0 0
        %1353 = vmatpush1.bf16.xpose.msra.mxu0 0
        %1354 = vmatprep.subr.bf16.mxu0 0
        %1355 = vmatpush1.bf16.xpose.msra.mxu0 0
        %1356 = vmatprep.subr.bf16.mxu0 0
        %1357 = vmatpush1.bf16.xpose.msra.mxu0 0
        %1358 = vmatprep.subr.bf16.mxu0 0
        %1359 = vmatpush1.bf16.xpose.msra.mxu0 0
        %1360 = vmatprep.subr.bf16.mxu0 0
        %1361 = vmatpush1.bf16.xpose.msra.mxu0 0
        %1362 = vmatprep.subr.bf16.mxu0 0
        %1363 = vmatpush1.bf16.xpose.msra.mxu0 0
        %1364 = vmatprep.mubr.bf16.mxu0 0
        %1365 = vmatmul.mubr.bf16.gmra.mrb[0].mxu0 %v1327
        %v1366 = vpop.f32.mrb[0].mxu0
        %v1367 = vadd.f32 %v1325, %v1366
        %v1368 = vpop.f32.mrb[0].mxu0
        %v1369 = vpop.f32.mrb[0].mxu0
        %v1370 = vpop.f32.mrb[0].mxu0
        %1371 = vdwg.mxu0
        %vm1372 = vcmask 64512
        %v1373 = vsel %vm1372, %v1367, -inf
        %1374 = vmax.xlane.f32.xlu0 %v1373
        %v1375 = vpop.xlane.xlu0 %1374
        %v1376 = vsub.f32 %v1367, %v1375
        %v1377 = vmul.f32 %v1376, 1.442695
        %v1378 = vpow.pop %v1377
        %v1379 = vsel %vm1372, %v1378, 0.0
        %1380 = vadd.xlane.f32.xlu0 %v1379
        %v1381 = vpop.xlane.xlu0 %1380
        %v1382 = vrcp.pop %v1381
        %v1383 = vmul.f32 %v1378, %v1382
        %v1384 = vpack.c.bf16 %v1383, %v1383
        %v1385 = vpack.c.bf16 %v1056, %v1056
        %v1387 = vsel %vm1372, %v1384, 0
        %vm1389 = vcmask 1043456
        %v1391 = vsel %vm1389, %v1385, 0
        %1393 = vmatprep.subr.bf16.mxu0 0
        %1394 = vmatpush1.bf16.msra.mxu0 %v1391
        %1395 = vmatprep.subr.bf16.mxu0 0
        %1396 = vmatpush1.bf16.msra.mxu0 0
        %1397 = vmatprep.subr.bf16.mxu0 0
        %1398 = vmatpush1.bf16.msra.mxu0 0
        %1399 = vmatprep.subr.bf16.mxu0 0
        %1400 = vmatpush1.bf16.msra.mxu0 0
        %1401 = vmatprep.subr.bf16.mxu0 0
        %1402 = vmatpush1.bf16.msra.mxu0 0
        %1403 = vmatprep.subr.bf16.mxu0 0
        %1404 = vmatpush1.bf16.msra.mxu0 0
        %1405 = vmatprep.subr.bf16.mxu0 0
        %1406 = vmatpush1.bf16.msra.mxu0 0
        %1407 = vmatprep.subr.bf16.mxu0 0
        %1408 = vmatpush1.bf16.msra.mxu0 0
        %1409 = vmatprep.subr.bf16.mxu0 0
        %1410 = vmatpush1.bf16.msra.mxu0 0
        %1411 = vmatprep.subr.bf16.mxu0 0
        %1412 = vmatpush1.bf16.msra.mxu0 0
        %1413 = vmatprep.subr.bf16.mxu0 0
        %1414 = vmatpush1.bf16.msra.mxu0 0
        %1415 = vmatprep.subr.bf16.mxu0 0
        %1416 = vmatpush1.bf16.msra.mxu0 0
        %1417 = vmatprep.subr.bf16.mxu0 0
        %1418 = vmatpush1.bf16.msra.mxu0 0
        %1419 = vmatprep.subr.bf16.mxu0 0
        %1420 = vmatpush1.bf16.msra.mxu0 0
        %1421 = vmatprep.subr.bf16.mxu0 0
        %1422 = vmatpush1.bf16.msra.mxu0 0
        %1423 = vmatprep.subr.bf16.mxu0 0
        %1424 = vmatpush1.bf16.msra.mxu0 0
        %1425 = vmatprep.mubr.bf16.mxu0 0
        %1426 = vmatmul.mubr.bf16.gmra.mrb[0].mxu0 %v1387
        %v1427 = vpop.f32.mrb[0].mxu0
        %v1428 = vadd.f32 0.0, %v1427
        %v1429 = vpop.f32.mrb[0].mxu0
        %v1430 = vpop.f32.mrb[0].mxu0
        %v1431 = vpop.f32.mrb[0].mxu0
        %1432 = vdwg.mxu0
        %v1433 = vpack.c.bf16 %v1428, %v1428
        %v1434 = vld [vmem:[%s707] sm:$0xf]
        %v1435 = vld [vmem:[%s707 + $0x4] sm:$0xf]
        %v1436 = vld [vmem:[%s707 + $0x8] sm:$0xf]
        %v1437 = vld [vmem:[%s707 + $0xc] sm:$0xf]
        %v1442 = vunpack.c.l.b16 %v1434
        %v1443 = vunpack.c.l.b16 %v1435
        %v1444 = vunpack.c.l.b16 %v1436
        %v1445 = vunpack.c.l.b16 %v1437
        %v1446 = vpack.c.b16 %v1443, %v1442
        %v1447 = vpack.c.b16 %v1445, %v1444
        %v1451 = vsel %vm1187, %v1433, 0
        %1453 = vmatprep.subr.bf16.mxu0 0
        %1454 = vmatpush1.bf16.msra.mxu0 %v1446
        %1455 = vmatprep.subr.bf16.mxu0 0
        %1456 = vmatpush1.bf16.msra.mxu0 %v1447
        %1457 = vmatprep.subr.bf16.mxu0 0
        %1458 = vmatpush1.bf16.msra.mxu0 0
        %1459 = vmatprep.subr.bf16.mxu0 0
        %1460 = vmatpush1.bf16.msra.mxu0 0
        %1461 = vmatprep.subr.bf16.mxu0 0
        %1462 = vmatpush1.bf16.msra.mxu0 0
        %1463 = vmatprep.subr.bf16.mxu0 0
        %1464 = vmatpush1.bf16.msra.mxu0 0
        %1465 = vmatprep.subr.bf16.mxu0 0
        %1466 = vmatpush1.bf16.msra.mxu0 0
        %1467 = vmatprep.subr.bf16.mxu0 0
        %1468 = vmatpush1.bf16.msra.mxu0 0
        %1469 = vmatprep.subr.bf16.mxu0 0
        %1470 = vmatpush1.bf16.msra.mxu0 0
        %1471 = vmatprep.subr.bf16.mxu0 0
        %1472 = vmatpush1.bf16.msra.mxu0 0
        %1473 = vmatprep.subr.bf16.mxu0 0
        %1474 = vmatpush1.bf16.msra.mxu0 0
        %1475 = vmatprep.subr.bf16.mxu0 0
        %1476 = vmatpush1.bf16.msra.mxu0 0
        %1477 = vmatprep.subr.bf16.mxu0 0
        %1478 = vmatpush1.bf16.msra.mxu0 0
        %1479 = vmatprep.subr.bf16.mxu0 0
        %1480 = vmatpush1.bf16.msra.mxu0 0
        %1481 = vmatprep.subr.bf16.mxu0 0
        %1482 = vmatpush1.bf16.msra.mxu0 0
        %1483 = vmatprep.subr.bf16.mxu0 0
        %1484 = vmatpush1.bf16.msra.mxu0 0
        %1485 = vmatprep.mubr.bf16.mxu0 0
        %1486 = vmatmul.mubr.bf16.gmra.mrb[0].mxu0 %v1451
        %v1487 = vpop.f32.mrb[0].mxu0
        %v1488 = vadd.f32 0.0, %v1487
        %v1489 = vpop.f32.mrb[0].mxu0
        %v1490 = vpop.f32.mrb[0].mxu0
        %v1491 = vpop.f32.mrb[0].mxu0
        %1492 = vdwg.mxu0
        %p1493 = scmp.eq.s32.totalorder %s34, 0
        // Predicated region
        $region81: #{tpu_custom_call.1} parent=79 // pred_check
          %p1494 = pneg %p1493
        $region82: #{tpu_custom_call.1} parent=79 // pred_check_branch
          %1496 = sbr.rel (%p1494) target = $region84
        $region83: #{tpu_custom_call.1} parent=79 // pred_region
          %v1497 = vld [vmem:[%s12] sm:$0x1]
          %v1499 = vlaneseq
          %v1500 = vshrl.u32 %v1499, 7
          %v1501 = vsub.s32 0, %v1500
          %v1502 = vrot.slane %v1497, %v1501
          %v1504 = vadd.f32 %v1488, %v1502
          %1505 = vst [vmem:[%s666] sm:$0xff] %v1504
        $region84: #{tpu_custom_call.1} parent=79 // pred_fallthru
          _
        %p1506 = scmp.ne.s32.totalorder %s34, 0
        // Predicated region
        $region85: #{tpu_custom_call.1} parent=79 // pred_check
          %p1507 = pneg %p1506
        $region86: #{tpu_custom_call.1} parent=79 // pred_check_branch
          %1509 = sbr.rel (%p1507) target = $region88
        $region87: #{tpu_custom_call.1} parent=79 // pred_region
          %v1510 = vld [vmem:[%s666] sm:$0xff]
          %v1511 = vadd.f32 %v1510, %v1488
          %1512 = vst [vmem:[%s666] sm:$0xff] %v1511
        $region88: #{tpu_custom_call.1} parent=79 // pred_fallthru
          _
        %s1513 = sand.u32 %s434, 1
        %s1514 = scalar_lea.sflag [#allocation3], %s1513
        %s1515 = sand.u32 %s434, 1
        %s1516 = smul.addr %s1515, 8
        %s1517 = scalar_lea.vmem [#allocation2], %s1516
        // Predicated region
        $region89: #{tpu_custom_call.1} parent=79 // pred_check
          %p1518 = pneg %p444
        $region90: #{tpu_custom_call.1} parent=79 // pred_check_branch
          %1520 = sbr.rel (%p1518) target = $region92
        $region91: #{tpu_custom_call.1} parent=79 // pred_region
          %s1522 = ssub.s32 128, 128
          %1523 = vsyncadd %s1514, %s1522
          %s1524 = smul.addr %s33, 128
          %s1525 = scalar_lea.hbm %s15, %s1524
          %s1527 = sshll.u32 %s1517, 4
          %s1528 = int_to_ptr.vmem [resolvable:$true] %s1527
          %1530 = dma.vmem_to_hbm [thread:$0]  %s1528, 128, %s1525, %s1514
        $region92: #{tpu_custom_call.1} parent=79 // pred_fallthru
          _
      $region80: #{tpu_custom_call.1} parent=5 // pred_fallthru
        _
      %p1531 = scmp.le.s32.totalorder 2, %s24
      // Predicated region
      $region93: #{tpu_custom_call.1} parent=5 // pred_check
        %p1532 = pneg %p1531
      $region94: #{tpu_custom_call.1} parent=5 // pred_check_branch
        %1534 = sbr.rel (%p1532) target = $region96
      $region95: #{tpu_custom_call.1} parent=5 // pred_region
        %s1535 = ssub.s32 %s24, 2
        // Predicated region
        $region97: #{tpu_custom_call.1} parent=95 // pred_check
          %p1536 = pneg %p450
        $region98: #{tpu_custom_call.1} parent=95 // pred_check_branch
          %1538 = sbr.rel (%p1536) target = $region100
        $region99: #{tpu_custom_call.1} parent=95 // pred_region
          %s1539 = sand.u32 %s435, 1
          %s1540 = scalar_lea.sflag [#allocation3], %s1539
          %s1541 = sand.u32 %s435, 1
          %s1542 = smul.addr %s1541, 8
          %s1543 = scalar_lea.vmem [#allocation2], %s1542
          %1544 = dma.done %s1540, 128
        $region100: #{tpu_custom_call.1} parent=95 // pred_fallthru
          _
      $region96: #{tpu_custom_call.1} parent=5 // pred_fallthru
        _
    $region6: #{tpu_custom_call.1} parent=1 // loop_footer
      %s28 = sadd.s32 1, %s24
    $region7: #{tpu_custom_call.1} parent=1 // loop_footer_branch
      %23 = sbr.rel target = $region3
    $region8: #{tpu_custom_call.1} parent=1 // loop_exit
      _
    %1545 = vsyncpa [#allocation3], 1
    %s1546 = scalar_lea.sflag [#allocation3], 1
    %1547 = vsyncpa %s1546, 1

</llo_original>
